<compile_context>
chip_gen: v7x
topology: tpu7x:2x2x1
jax: 0.10.0
libtpu: 0.0.40
codegen_flags: <defaults>
</compile_context>

<pallas_src>
import functools

import jax
import jax.numpy as jnp
import numpy as np
from jax.experimental import pallas as pl
from jax.experimental.pallas import tpu as pltpu

LN_EPS = 1e-5        # torch.nn.LayerNorm default eps
NUM_HEADS = 4


def _zero_map(nd):
    return lambda i: (0,) * nd


# ---------------- fused Pallas kernel ----------------

def fused_block_kernel(x_ref, g_ref, b_ref, wqkv_ref, wproj_ref, bproj_ref,
                       o_ref, *, n_seq, batch, heads, scale):
    """x_ref: (M, C) with M = B*N, batch-major rows (rows b*N .. b*N+N-1 = batch b)."""
    x = x_ref[...]                                               # (M, C) f32
    c = x.shape[-1]
    dh = c // heads

    # ---- norm1 (LayerNorm over channels) ----
    mu = jnp.mean(x, axis=-1, keepdims=True)
    var = jnp.mean((x - mu) ** 2, axis=-1, keepdims=True)
    xn = (x - mu) * jax.lax.rsqrt(var + LN_EPS) * g_ref[...] + b_ref[...]

    # ---- QKV projection (qkv_bias=False in Block.__init__): one (M,C)@(C,3C) dot ----
    qkv = jnp.dot(xn, wqkv_ref[...], preferred_element_type=jnp.float32)   # (M, 3C)

    # ---- attention, per (batch, head), fully unrolled; everything stays in VMEM ----
    batch_outs = []
    for bb in range(batch):
        r0, r1 = bb * n_seq, (bb + 1) * n_seq
        head_outs = []
        for h in range(heads):
            c0 = h * dh
            q = qkv[r0:r1, c0:c0 + dh]                           # (N, Dh)
            k = qkv[r0:r1, c + c0:c + c0 + dh]                   # (N, Dh)
            v = qkv[r0:r1, 2 * c + c0:2 * c + c0 + dh]           # (N, Dh)
            s = jax.lax.dot_general(q, k, (((1,), (1,)), ((), ())),
                                    preferred_element_type=jnp.float32) * scale
            s = s - jnp.max(s, axis=-1, keepdims=True)
            p = jnp.exp(s)
            p = p * pl.reciprocal(jnp.sum(p, axis=-1, keepdims=True), approx=True)
            head_outs.append(jnp.dot(p, v, preferred_element_type=jnp.float32))
        batch_outs.append(jnp.concatenate(head_outs, axis=-1))   # (N, C)
    attn_out = jnp.concatenate(batch_outs, axis=0)               # (M, C)

    # ---- output projection + bias + residual; single dense (M, C) store ----
    o_ref[...] = (x
                  + jnp.dot(attn_out, wproj_ref[...],
                            preferred_element_type=jnp.float32)
                  + bproj_ref[...])


# ---------------- wrapper ----------------

def fused_block(x2d, g1, b1, wqkv, wproj, bproj, *, n_seq, batch, heads, scale):
    m, c = x2d.shape
    args = (x2d, g1, b1, wqkv, wproj, bproj)
    in_specs = [pl.BlockSpec(a.shape, _zero_map(a.ndim)) for a in args]
    return pl.pallas_call(
        functools.partial(fused_block_kernel, n_seq=n_seq, batch=batch,
                          heads=heads, scale=scale),
        out_shape=jax.ShapeDtypeStruct((m, c), jnp.float32),
        grid=(1,),
        in_specs=in_specs,
        out_specs=pl.BlockSpec((m, c), _zero_map(2)),
        compiler_params=pltpu.CompilerParams(
            dimension_semantics=("arbitrary",)),
    )(*args)


@jax.jit
def block_forward(x, params):
    """Block.forward with policy=None, sampler=None: returns x + attn(norm1(x))."""
    n_seq, batch, c = x.shape
    heads = NUM_HEADS
    scale = (c // heads) ** (-0.5)

    # batch-major 2-D slab (one tiny boundary transpose; no inter-kernel permute chain)
    x2d = jnp.transpose(x, (1, 0, 2)).reshape(batch * n_seq, c)
    y2d = fused_block(x2d,
                      params["ln1_g"], params["ln1_b"],
                      params["w_qkv"], params["w_proj"], params["b_proj"],
                      n_seq=n_seq, batch=batch, heads=heads, scale=scale)
    return jnp.transpose(y2d.reshape(batch, n_seq, c), (1, 0, 2))


# ---------------- pure-JAX reference (verification) ----------------

def reference_block(x, params):
    N, B, C = x.shape
    H = NUM_HEADS
    Dh = C // H
    scale = Dh ** (-0.5)

    def ln(t, g, b):
        mu = t.mean(-1, keepdims=True)
        var = ((t - mu) ** 2).mean(-1, keepdims=True)
        return (t - mu) / jnp.sqrt(var + LN_EPS) * g.reshape(-1) + b.reshape(-1)

    xn = ln(x, params["ln1_g"], params["ln1_b"])
    qkv = jnp.einsum("nbc,cd->nbd", xn, params["w_qkv"])
    qkv5 = qkv.reshape(N, B, 3, H, Dh).transpose(2, 1, 3, 0, 4)
    q, k, v = qkv5[0], qkv5[1], qkv5[2]
    s = jnp.einsum("bhnd,bhmd->bhnm", q, k) * scale
    p = jax.nn.softmax(s, axis=-1)
    o = jnp.einsum("bhnm,bhmd->bhnd", p, v)
    o = o.transpose(0, 2, 1, 3).reshape(B, N, C).transpose(1, 0, 2)
    proj = jnp.einsum("nbc,cd->nbd", o, params["w_proj"]) + params["b_proj"].reshape(-1)
    return x + proj


# ---------------- main ----------------

if __name__ == "__main__":
    N, B, C = 8, 2, 32          # seq, batch, channels
    H = NUM_HEADS               # 4 heads, head_dim = 8

    keys = jax.random.split(jax.random.PRNGKey(0), 7)
    x = jax.random.normal(keys[0], (N, B, C), jnp.float32)

    params = {
        "ln1_g": 1.0 + 0.1 * jax.random.normal(keys[1], (1, C), jnp.float32),
        "ln1_b": 0.05 * jax.random.normal(keys[2], (1, C), jnp.float32),
        "w_qkv": 0.05 * jax.random.normal(keys[3], (C, 3 * C), jnp.float32),
        "w_proj": 0.05 * jax.random.normal(keys[4], (C, C), jnp.float32),
        "b_proj": 0.05 * jax.random.normal(keys[5], (1, C), jnp.float32),
    }

    y = block_forward(x, params)
    jax.block_until_ready(y)

    y_ref = reference_block(x, params)
    np.testing.assert_allclose(np.asarray(y), np.asarray(y_ref), rtol=2e-2, atol=2e-2)

    print("KERNEL_OK")
</pallas_src>

<mosaic_0001>
module attributes {stable_mosaic.version = 11 : i64} {
  func.func @fused_block_kernel(%arg0: i32, %arg1: memref<16x32xf32, #tpu.memory_space<vmem>>, %arg2: memref<1x32xf32, #tpu.memory_space<vmem>>, %arg3: memref<1x32xf32, #tpu.memory_space<vmem>>, %arg4: memref<32x96xf32, #tpu.memory_space<vmem>>, %arg5: memref<32x32xf32, #tpu.memory_space<vmem>>, %arg6: memref<1x32xf32, #tpu.memory_space<vmem>>, %arg7: memref<16x32xf32, #tpu.memory_space<vmem>>) attributes {dimension_semantics = [#tpu.dimension_semantics<arbitrary>], iteration_bounds = array<i64: 1>, scalar_prefetch = 0 : i64, scratch_operands = 0 : i64, tpu.core_type = #tpu.core_type<tc>, window_params = [{pipeline_mode = #tpu.pipeline_mode<synchronous>, transform_indices = @transform_0, window_bounds = array<i64: 16, 32>}, {pipeline_mode = #tpu.pipeline_mode<synchronous>, transform_indices = @transform_1, window_bounds = array<i64: 1, 32>}, {pipeline_mode = #tpu.pipeline_mode<synchronous>, transform_indices = @transform_2, window_bounds = array<i64: 1, 32>}, {pipeline_mode = #tpu.pipeline_mode<synchronous>, transform_indices = @transform_3, window_bounds = array<i64: 32, 96>}, {pipeline_mode = #tpu.pipeline_mode<synchronous>, transform_indices = @transform_4, window_bounds = array<i64: 32, 32>}, {pipeline_mode = #tpu.pipeline_mode<synchronous>, transform_indices = @transform_5, window_bounds = array<i64: 1, 32>}, {pipeline_mode = #tpu.pipeline_mode<synchronous>, transform_indices = @transform_6, window_bounds = array<i64: 16, 32>}]} {
    %c0 = arith.constant 0 : index
    %c0_0 = arith.constant 0 : index
    %0 = vector.load %arg1[%c0, %c0_0] : memref<16x32xf32, #tpu.memory_space<vmem>>, vector<16x32xf32>
    %cst = arith.constant dense<0.000000e+00> : vector<16xf32>
    %1 = vector.multi_reduction <add>, %0, %cst [1] : vector<16x32xf32> to vector<16xf32>
    %2 = vector.shape_cast %1 : vector<16xf32> to vector<16x1xf32>
    %cst_1 = arith.constant 3.200000e+01 : f32
    %3 = vector.broadcast %cst_1 : f32 to vector<16x1xf32>
    %4 = arith.divf %2, %3 : vector<16x1xf32>
    %5 = vector.broadcast %4 : vector<16x1xf32> to vector<16x32xf32>
    %6 = arith.subf %0, %5 : vector<16x32xf32>
    %7 = arith.mulf %6, %6 : vector<16x32xf32>
    %cst_2 = arith.constant dense<0.000000e+00> : vector<16xf32>
    %8 = vector.multi_reduction <add>, %7, %cst_2 [1] : vector<16x32xf32> to vector<16xf32>
    %9 = vector.shape_cast %8 : vector<16xf32> to vector<16x1xf32>
    %cst_3 = arith.constant 3.200000e+01 : f32
    %10 = vector.broadcast %cst_3 : f32 to vector<16x1xf32>
    %11 = arith.divf %9, %10 : vector<16x1xf32>
    %12 = vector.broadcast %4 : vector<16x1xf32> to vector<16x32xf32>
    %13 = arith.subf %0, %12 : vector<16x32xf32>
    %cst_4 = arith.constant 9.99999974E-6 : f32
    %14 = vector.broadcast %cst_4 : f32 to vector<16x1xf32>
    %15 = arith.addf %11, %14 : vector<16x1xf32>
    %16 = math.rsqrt %15 : vector<16x1xf32>
    %17 = vector.broadcast %16 : vector<16x1xf32> to vector<16x32xf32>
    %18 = arith.mulf %13, %17 : vector<16x32xf32>
    %c0_5 = arith.constant 0 : index
    %c0_6 = arith.constant 0 : index
    %19 = vector.load %arg2[%c0_5, %c0_6] : memref<1x32xf32, #tpu.memory_space<vmem>>, vector<1x32xf32>
    %20 = vector.broadcast %19 : vector<1x32xf32> to vector<16x32xf32>
    %21 = arith.mulf %18, %20 : vector<16x32xf32>
    %c0_7 = arith.constant 0 : index
    %c0_8 = arith.constant 0 : index
    %22 = vector.load %arg3[%c0_7, %c0_8] : memref<1x32xf32, #tpu.memory_space<vmem>>, vector<1x32xf32>
    %23 = vector.broadcast %22 : vector<1x32xf32> to vector<16x32xf32>
    %24 = arith.addf %21, %23 : vector<16x32xf32>
    %c0_9 = arith.constant 0 : index
    %c0_10 = arith.constant 0 : index
    %25 = vector.load %arg4[%c0_9, %c0_10] : memref<32x96xf32, #tpu.memory_space<vmem>>, vector<32x96xf32>
    %cst_11 = arith.constant dense<0.000000e+00> : vector<16x96xf32>
    %26 = tpu.matmul %24, %25, %cst_11 {dimension_numbers = #tpu.dot_dimension_numbers<[1], [0], [0], [1], [0, 0, 1, 1], [], []>} : vector<16x32xf32>, vector<32x96xf32>, vector<16x96xf32> -> vector<16x96xf32>
    %27 = vector.extract_strided_slice %26 {offsets = [0, 0], sizes = [8, 8], strides = [1, 1]} : vector<16x96xf32> to vector<8x8xf32>
    %28 = vector.extract_strided_slice %26 {offsets = [0, 32], sizes = [8, 8], strides = [1, 1]} : vector<16x96xf32> to vector<8x8xf32>
    %29 = vector.extract_strided_slice %26 {offsets = [0, 64], sizes = [8, 8], strides = [1, 1]} : vector<16x96xf32> to vector<8x8xf32>
    %cst_12 = arith.constant dense<0.000000e+00> : vector<8x8xf32>
    %30 = tpu.matmul %27, %28, %cst_12 {dimension_numbers = #tpu.dot_dimension_numbers<[1], [1], [0], [0], [0, 0, 1, 0], [], []>} : vector<8x8xf32>, vector<8x8xf32>, vector<8x8xf32> -> vector<8x8xf32>
    %cst_13 = arith.constant 0.353553385 : f32
    %31 = vector.broadcast %cst_13 : f32 to vector<8x8xf32>
    %32 = arith.mulf %30, %31 : vector<8x8xf32>
    %cst_14 = arith.constant dense<0xFF800000> : vector<8xf32>
    %33 = vector.multi_reduction <maximumf>, %32, %cst_14 [1] : vector<8x8xf32> to vector<8xf32>
    %34 = vector.shape_cast %33 : vector<8xf32> to vector<8x1xf32>
    %35 = vector.broadcast %34 : vector<8x1xf32> to vector<8x8xf32>
    %36 = arith.subf %32, %35 : vector<8x8xf32>
    %37 = math.exp %36 : vector<8x8xf32>
    %cst_15 = arith.constant dense<0.000000e+00> : vector<8xf32>
    %38 = vector.multi_reduction <add>, %37, %cst_15 [1] : vector<8x8xf32> to vector<8xf32>
    %39 = vector.shape_cast %38 : vector<8xf32> to vector<8x1xf32>
    %40 = tpu.reciprocal %39 {approx = true} : vector<8x1xf32> -> vector<8x1xf32>
    %41 = vector.broadcast %40 : vector<8x1xf32> to vector<8x8xf32>
    %42 = arith.mulf %37, %41 : vector<8x8xf32>
    %cst_16 = arith.constant dense<0.000000e+00> : vector<8x8xf32>
    %43 = tpu.matmul %42, %29, %cst_16 {dimension_numbers = #tpu.dot_dimension_numbers<[1], [0], [0], [1], [0, 0, 1, 1], [], []>} : vector<8x8xf32>, vector<8x8xf32>, vector<8x8xf32> -> vector<8x8xf32>
    %44 = vector.extract_strided_slice %26 {offsets = [0, 8], sizes = [8, 8], strides = [1, 1]} : vector<16x96xf32> to vector<8x8xf32>
    %45 = vector.extract_strided_slice %26 {offsets = [0, 40], sizes = [8, 8], strides = [1, 1]} : vector<16x96xf32> to vector<8x8xf32>
    %46 = vector.extract_strided_slice %26 {offsets = [0, 72], sizes = [8, 8], strides = [1, 1]} : vector<16x96xf32> to vector<8x8xf32>
    %cst_17 = arith.constant dense<0.000000e+00> : vector<8x8xf32>
    %47 = tpu.matmul %44, %45, %cst_17 {dimension_numbers = #tpu.dot_dimension_numbers<[1], [1], [0], [0], [0, 0, 1, 0], [], []>} : vector<8x8xf32>, vector<8x8xf32>, vector<8x8xf32> -> vector<8x8xf32>
    %cst_18 = arith.constant 0.353553385 : f32
    %48 = vector.broadcast %cst_18 : f32 to vector<8x8xf32>
    %49 = arith.mulf %47, %48 : vector<8x8xf32>
    %cst_19 = arith.constant dense<0xFF800000> : vector<8xf32>
    %50 = vector.multi_reduction <maximumf>, %49, %cst_19 [1] : vector<8x8xf32> to vector<8xf32>
    %51 = vector.shape_cast %50 : vector<8xf32> to vector<8x1xf32>
    %52 = vector.broadcast %51 : vector<8x1xf32> to vector<8x8xf32>
    %53 = arith.subf %49, %52 : vector<8x8xf32>
    %54 = math.exp %53 : vector<8x8xf32>
    %cst_20 = arith.constant dense<0.000000e+00> : vector<8xf32>
    %55 = vector.multi_reduction <add>, %54, %cst_20 [1] : vector<8x8xf32> to vector<8xf32>
    %56 = vector.shape_cast %55 : vector<8xf32> to vector<8x1xf32>
    %57 = tpu.reciprocal %56 {approx = true} : vector<8x1xf32> -> vector<8x1xf32>
    %58 = vector.broadcast %57 : vector<8x1xf32> to vector<8x8xf32>
    %59 = arith.mulf %54, %58 : vector<8x8xf32>
    %cst_21 = arith.constant dense<0.000000e+00> : vector<8x8xf32>
    %60 = tpu.matmul %59, %46, %cst_21 {dimension_numbers = #tpu.dot_dimension_numbers<[1], [0], [0], [1], [0, 0, 1, 1], [], []>} : vector<8x8xf32>, vector<8x8xf32>, vector<8x8xf32> -> vector<8x8xf32>
    %61 = vector.extract_strided_slice %26 {offsets = [0, 16], sizes = [8, 8], strides = [1, 1]} : vector<16x96xf32> to vector<8x8xf32>
    %62 = vector.extract_strided_slice %26 {offsets = [0, 48], sizes = [8, 8], strides = [1, 1]} : vector<16x96xf32> to vector<8x8xf32>
    %63 = vector.extract_strided_slice %26 {offsets = [0, 80], sizes = [8, 8], strides = [1, 1]} : vector<16x96xf32> to vector<8x8xf32>
    %cst_22 = arith.constant dense<0.000000e+00> : vector<8x8xf32>
    %64 = tpu.matmul %61, %62, %cst_22 {dimension_numbers = #tpu.dot_dimension_numbers<[1], [1], [0], [0], [0, 0, 1, 0], [], []>} : vector<8x8xf32>, vector<8x8xf32>, vector<8x8xf32> -> vector<8x8xf32>
    %cst_23 = arith.constant 0.353553385 : f32
    %65 = vector.broadcast %cst_23 : f32 to vector<8x8xf32>
    %66 = arith.mulf %64, %65 : vector<8x8xf32>
    %cst_24 = arith.constant dense<0xFF800000> : vector<8xf32>
    %67 = vector.multi_reduction <maximumf>, %66, %cst_24 [1] : vector<8x8xf32> to vector<8xf32>
    %68 = vector.shape_cast %67 : vector<8xf32> to vector<8x1xf32>
    %69 = vector.broadcast %68 : vector<8x1xf32> to vector<8x8xf32>
    %70 = arith.subf %66, %69 : vector<8x8xf32>
    %71 = math.exp %70 : vector<8x8xf32>
    %cst_25 = arith.constant dense<0.000000e+00> : vector<8xf32>
    %72 = vector.multi_reduction <add>, %71, %cst_25 [1] : vector<8x8xf32> to vector<8xf32>
    %73 = vector.shape_cast %72 : vector<8xf32> to vector<8x1xf32>
    %74 = tpu.reciprocal %73 {approx = true} : vector<8x1xf32> -> vector<8x1xf32>
    %75 = vector.broadcast %74 : vector<8x1xf32> to vector<8x8xf32>
    %76 = arith.mulf %71, %75 : vector<8x8xf32>
    %cst_26 = arith.constant dense<0.000000e+00> : vector<8x8xf32>
    %77 = tpu.matmul %76, %63, %cst_26 {dimension_numbers = #tpu.dot_dimension_numbers<[1], [0], [0], [1], [0, 0, 1, 1], [], []>} : vector<8x8xf32>, vector<8x8xf32>, vector<8x8xf32> -> vector<8x8xf32>
    %78 = vector.extract_strided_slice %26 {offsets = [0, 24], sizes = [8, 8], strides = [1, 1]} : vector<16x96xf32> to vector<8x8xf32>
    %79 = vector.extract_strided_slice %26 {offsets = [0, 56], sizes = [8, 8], strides = [1, 1]} : vector<16x96xf32> to vector<8x8xf32>
    %80 = vector.extract_strided_slice %26 {offsets = [0, 88], sizes = [8, 8], strides = [1, 1]} : vector<16x96xf32> to vector<8x8xf32>
    %cst_27 = arith.constant dense<0.000000e+00> : vector<8x8xf32>
    %81 = tpu.matmul %78, %79, %cst_27 {dimension_numbers = #tpu.dot_dimension_numbers<[1], [1], [0], [0], [0, 0, 1, 0], [], []>} : vector<8x8xf32>, vector<8x8xf32>, vector<8x8xf32> -> vector<8x8xf32>
    %cst_28 = arith.constant 0.353553385 : f32
    %82 = vector.broadcast %cst_28 : f32 to vector<8x8xf32>
    %83 = arith.mulf %81, %82 : vector<8x8xf32>
    %cst_29 = arith.constant dense<0xFF800000> : vector<8xf32>
    %84 = vector.multi_reduction <maximumf>, %83, %cst_29 [1] : vector<8x8xf32> to vector<8xf32>
    %85 = vector.shape_cast %84 : vector<8xf32> to vector<8x1xf32>
    %86 = vector.broadcast %85 : vector<8x1xf32> to vector<8x8xf32>
    %87 = arith.subf %83, %86 : vector<8x8xf32>
    %88 = math.exp %87 : vector<8x8xf32>
    %cst_30 = arith.constant dense<0.000000e+00> : vector<8xf32>
    %89 = vector.multi_reduction <add>, %88, %cst_30 [1] : vector<8x8xf32> to vector<8xf32>
    %90 = vector.shape_cast %89 : vector<8xf32> to vector<8x1xf32>
    %91 = tpu.reciprocal %90 {approx = true} : vector<8x1xf32> -> vector<8x1xf32>
    %92 = vector.broadcast %91 : vector<8x1xf32> to vector<8x8xf32>
    %93 = arith.mulf %88, %92 : vector<8x8xf32>
    %cst_31 = arith.constant dense<0.000000e+00> : vector<8x8xf32>
    %94 = tpu.matmul %93, %80, %cst_31 {dimension_numbers = #tpu.dot_dimension_numbers<[1], [0], [0], [1], [0, 0, 1, 1], [], []>} : vector<8x8xf32>, vector<8x8xf32>, vector<8x8xf32> -> vector<8x8xf32>
    %95 = tpu.concatenate %43, %60, %77, %94 in 1 : vector<8x8xf32>, vector<8x8xf32>, vector<8x8xf32>, vector<8x8xf32> -> vector<8x32xf32>
    %96 = vector.extract_strided_slice %26 {offsets = [8, 0], sizes = [8, 8], strides = [1, 1]} : vector<16x96xf32> to vector<8x8xf32>
    %97 = vector.extract_strided_slice %26 {offsets = [8, 32], sizes = [8, 8], strides = [1, 1]} : vector<16x96xf32> to vector<8x8xf32>
    %98 = vector.extract_strided_slice %26 {offsets = [8, 64], sizes = [8, 8], strides = [1, 1]} : vector<16x96xf32> to vector<8x8xf32>
    %cst_32 = arith.constant dense<0.000000e+00> : vector<8x8xf32>
    %99 = tpu.matmul %96, %97, %cst_32 {dimension_numbers = #tpu.dot_dimension_numbers<[1], [1], [0], [0], [0, 0, 1, 0], [], []>} : vector<8x8xf32>, vector<8x8xf32>, vector<8x8xf32> -> vector<8x8xf32>
    %cst_33 = arith.constant 0.353553385 : f32
    %100 = vector.broadcast %cst_33 : f32 to vector<8x8xf32>
    %101 = arith.mulf %99, %100 : vector<8x8xf32>
    %cst_34 = arith.constant dense<0xFF800000> : vector<8xf32>
    %102 = vector.multi_reduction <maximumf>, %101, %cst_34 [1] : vector<8x8xf32> to vector<8xf32>
    %103 = vector.shape_cast %102 : vector<8xf32> to vector<8x1xf32>
    %104 = vector.broadcast %103 : vector<8x1xf32> to vector<8x8xf32>
    %105 = arith.subf %101, %104 : vector<8x8xf32>
    %106 = math.exp %105 : vector<8x8xf32>
    %cst_35 = arith.constant dense<0.000000e+00> : vector<8xf32>
    %107 = vector.multi_reduction <add>, %106, %cst_35 [1] : vector<8x8xf32> to vector<8xf32>
    %108 = vector.shape_cast %107 : vector<8xf32> to vector<8x1xf32>
    %109 = tpu.reciprocal %108 {approx = true} : vector<8x1xf32> -> vector<8x1xf32>
    %110 = vector.broadcast %109 : vector<8x1xf32> to vector<8x8xf32>
    %111 = arith.mulf %106, %110 : vector<8x8xf32>
    %cst_36 = arith.constant dense<0.000000e+00> : vector<8x8xf32>
    %112 = tpu.matmul %111, %98, %cst_36 {dimension_numbers = #tpu.dot_dimension_numbers<[1], [0], [0], [1], [0, 0, 1, 1], [], []>} : vector<8x8xf32>, vector<8x8xf32>, vector<8x8xf32> -> vector<8x8xf32>
    %113 = vector.extract_strided_slice %26 {offsets = [8, 8], sizes = [8, 8], strides = [1, 1]} : vector<16x96xf32> to vector<8x8xf32>
    %114 = vector.extract_strided_slice %26 {offsets = [8, 40], sizes = [8, 8], strides = [1, 1]} : vector<16x96xf32> to vector<8x8xf32>
    %115 = vector.extract_strided_slice %26 {offsets = [8, 72], sizes = [8, 8], strides = [1, 1]} : vector<16x96xf32> to vector<8x8xf32>
    %cst_37 = arith.constant dense<0.000000e+00> : vector<8x8xf32>
    %116 = tpu.matmul %113, %114, %cst_37 {dimension_numbers = #tpu.dot_dimension_numbers<[1], [1], [0], [0], [0, 0, 1, 0], [], []>} : vector<8x8xf32>, vector<8x8xf32>, vector<8x8xf32> -> vector<8x8xf32>
    %cst_38 = arith.constant 0.353553385 : f32
    %117 = vector.broadcast %cst_38 : f32 to vector<8x8xf32>
    %118 = arith.mulf %116, %117 : vector<8x8xf32>
    %cst_39 = arith.constant dense<0xFF800000> : vector<8xf32>
    %119 = vector.multi_reduction <maximumf>, %118, %cst_39 [1] : vector<8x8xf32> to vector<8xf32>
    %120 = vector.shape_cast %119 : vector<8xf32> to vector<8x1xf32>
    %121 = vector.broadcast %120 : vector<8x1xf32> to vector<8x8xf32>
    %122 = arith.subf %118, %121 : vector<8x8xf32>
    %123 = math.exp %122 : vector<8x8xf32>
    %cst_40 = arith.constant dense<0.000000e+00> : vector<8xf32>
    %124 = vector.multi_reduction <add>, %123, %cst_40 [1] : vector<8x8xf32> to vector<8xf32>
    %125 = vector.shape_cast %124 : vector<8xf32> to vector<8x1xf32>
    %126 = tpu.reciprocal %125 {approx = true} : vector<8x1xf32> -> vector<8x1xf32>
    %127 = vector.broadcast %126 : vector<8x1xf32> to vector<8x8xf32>
    %128 = arith.mulf %123, %127 : vector<8x8xf32>
    %cst_41 = arith.constant dense<0.000000e+00> : vector<8x8xf32>
    %129 = tpu.matmul %128, %115, %cst_41 {dimension_numbers = #tpu.dot_dimension_numbers<[1], [0], [0], [1], [0, 0, 1, 1], [], []>} : vector<8x8xf32>, vector<8x8xf32>, vector<8x8xf32> -> vector<8x8xf32>
    %130 = vector.extract_strided_slice %26 {offsets = [8, 16], sizes = [8, 8], strides = [1, 1]} : vector<16x96xf32> to vector<8x8xf32>
    %131 = vector.extract_strided_slice %26 {offsets = [8, 48], sizes = [8, 8], strides = [1, 1]} : vector<16x96xf32> to vector<8x8xf32>
    %132 = vector.extract_strided_slice %26 {offsets = [8, 80], sizes = [8, 8], strides = [1, 1]} : vector<16x96xf32> to vector<8x8xf32>
    %cst_42 = arith.constant dense<0.000000e+00> : vector<8x8xf32>
    %133 = tpu.matmul %130, %131, %cst_42 {dimension_numbers = #tpu.dot_dimension_numbers<[1], [1], [0], [0], [0, 0, 1, 0], [], []>} : vector<8x8xf32>, vector<8x8xf32>, vector<8x8xf32> -> vector<8x8xf32>
    %cst_43 = arith.constant 0.353553385 : f32
    %134 = vector.broadcast %cst_43 : f32 to vector<8x8xf32>
    %135 = arith.mulf %133, %134 : vector<8x8xf32>
    %cst_44 = arith.constant dense<0xFF800000> : vector<8xf32>
    %136 = vector.multi_reduction <maximumf>, %135, %cst_44 [1] : vector<8x8xf32> to vector<8xf32>
    %137 = vector.shape_cast %136 : vector<8xf32> to vector<8x1xf32>
    %138 = vector.broadcast %137 : vector<8x1xf32> to vector<8x8xf32>
    %139 = arith.subf %135, %138 : vector<8x8xf32>
    %140 = math.exp %139 : vector<8x8xf32>
    %cst_45 = arith.constant dense<0.000000e+00> : vector<8xf32>
    %141 = vector.multi_reduction <add>, %140, %cst_45 [1] : vector<8x8xf32> to vector<8xf32>
    %142 = vector.shape_cast %141 : vector<8xf32> to vector<8x1xf32>
    %143 = tpu.reciprocal %142 {approx = true} : vector<8x1xf32> -> vector<8x1xf32>
    %144 = vector.broadcast %143 : vector<8x1xf32> to vector<8x8xf32>
    %145 = arith.mulf %140, %144 : vector<8x8xf32>
    %cst_46 = arith.constant dense<0.000000e+00> : vector<8x8xf32>
    %146 = tpu.matmul %145, %132, %cst_46 {dimension_numbers = #tpu.dot_dimension_numbers<[1], [0], [0], [1], [0, 0, 1, 1], [], []>} : vector<8x8xf32>, vector<8x8xf32>, vector<8x8xf32> -> vector<8x8xf32>
    %147 = vector.extract_strided_slice %26 {offsets = [8, 24], sizes = [8, 8], strides = [1, 1]} : vector<16x96xf32> to vector<8x8xf32>
    %148 = vector.extract_strided_slice %26 {offsets = [8, 56], sizes = [8, 8], strides = [1, 1]} : vector<16x96xf32> to vector<8x8xf32>
    %149 = vector.extract_strided_slice %26 {offsets = [8, 88], sizes = [8, 8], strides = [1, 1]} : vector<16x96xf32> to vector<8x8xf32>
    %cst_47 = arith.constant dense<0.000000e+00> : vector<8x8xf32>
    %150 = tpu.matmul %147, %148, %cst_47 {dimension_numbers = #tpu.dot_dimension_numbers<[1], [1], [0], [0], [0, 0, 1, 0], [], []>} : vector<8x8xf32>, vector<8x8xf32>, vector<8x8xf32> -> vector<8x8xf32>
    %cst_48 = arith.constant 0.353553385 : f32
    %151 = vector.broadcast %cst_48 : f32 to vector<8x8xf32>
    %152 = arith.mulf %150, %151 : vector<8x8xf32>
    %cst_49 = arith.constant dense<0xFF800000> : vector<8xf32>
    %153 = vector.multi_reduction <maximumf>, %152, %cst_49 [1] : vector<8x8xf32> to vector<8xf32>
    %154 = vector.shape_cast %153 : vector<8xf32> to vector<8x1xf32>
    %155 = vector.broadcast %154 : vector<8x1xf32> to vector<8x8xf32>
    %156 = arith.subf %152, %155 : vector<8x8xf32>
    %157 = math.exp %156 : vector<8x8xf32>
    %cst_50 = arith.constant dense<0.000000e+00> : vector<8xf32>
    %158 = vector.multi_reduction <add>, %157, %cst_50 [1] : vector<8x8xf32> to vector<8xf32>
    %159 = vector.shape_cast %158 : vector<8xf32> to vector<8x1xf32>
    %160 = tpu.reciprocal %159 {approx = true} : vector<8x1xf32> -> vector<8x1xf32>
    %161 = vector.broadcast %160 : vector<8x1xf32> to vector<8x8xf32>
    %162 = arith.mulf %157, %161 : vector<8x8xf32>
    %cst_51 = arith.constant dense<0.000000e+00> : vector<8x8xf32>
    %163 = tpu.matmul %162, %149, %cst_51 {dimension_numbers = #tpu.dot_dimension_numbers<[1], [0], [0], [1], [0, 0, 1, 1], [], []>} : vector<8x8xf32>, vector<8x8xf32>, vector<8x8xf32> -> vector<8x8xf32>
    %164 = tpu.concatenate %112, %129, %146, %163 in 1 : vector<8x8xf32>, vector<8x8xf32>, vector<8x8xf32>, vector<8x8xf32> -> vector<8x32xf32>
    %165 = tpu.concatenate %95, %164 in 0 : vector<8x32xf32>, vector<8x32xf32> -> vector<16x32xf32>
    %c0_52 = arith.constant 0 : index
    %c0_53 = arith.constant 0 : index
    %166 = vector.load %arg5[%c0_52, %c0_53] : memref<32x32xf32, #tpu.memory_space<vmem>>, vector<32x32xf32>
    %cst_54 = arith.constant dense<0.000000e+00> : vector<16x32xf32>
    %167 = tpu.matmul %165, %166, %cst_54 {dimension_numbers = #tpu.dot_dimension_numbers<[1], [0], [0], [1], [0, 0, 1, 1], [], []>} : vector<16x32xf32>, vector<32x32xf32>, vector<16x32xf32> -> vector<16x32xf32>
    %168 = arith.addf %0, %167 : vector<16x32xf32>
    %c0_55 = arith.constant 0 : index
    %c0_56 = arith.constant 0 : index
    %169 = vector.load %arg6[%c0_55, %c0_56] : memref<1x32xf32, #tpu.memory_space<vmem>>, vector<1x32xf32>
    %170 = vector.broadcast %169 : vector<1x32xf32> to vector<16x32xf32>
    %171 = arith.addf %168, %170 : vector<16x32xf32>
    %c0_57 = arith.constant 0 : index
    %c0_58 = arith.constant 0 : index
    %172 = vector.load %arg7[%c0_57, %c0_58] : memref<16x32xf32, #tpu.memory_space<vmem>>, vector<16x32xf32>
    tpu.vector_store %arg7[%c0_57, %c0_58], %171 {strides = array<i32>} : memref<16x32xf32, #tpu.memory_space<vmem>>, vector<16x32xf32>,
    return
  }
  func.func @transform_0(%arg0: i32) -> (i32, i32) {
    %c0_i32 = arith.constant 0 : i32
    %c0_i32_0 = arith.constant 0 : i32
    %c0_i32_1 = arith.constant 0 : i32
    return %c0_i32, %c0_i32_0 : i32, i32
  }
  func.func @transform_1(%arg0: i32) -> (i32, i32) {
    %c0_i32 = arith.constant 0 : i32
    %c0_i32_0 = arith.constant 0 : i32
    %c0_i32_1 = arith.constant 0 : i32
    return %c0_i32, %c0_i32_0 : i32, i32
  }
  func.func @transform_2(%arg0: i32) -> (i32, i32) {
    %c0_i32 = arith.constant 0 : i32
    %c0_i32_0 = arith.constant 0 : i32
    %c0_i32_1 = arith.constant 0 : i32
    return %c0_i32, %c0_i32_0 : i32, i32
  }
  func.func @transform_3(%arg0: i32) -> (i32, i32) {
    %c0_i32 = arith.constant 0 : i32
    %c0_i32_0 = arith.constant 0 : i32
    %c0_i32_1 = arith.constant 0 : i32
    return %c0_i32, %c0_i32_0 : i32, i32
  }
  func.func @transform_4(%arg0: i32) -> (i32, i32) {
    %c0_i32 = arith.constant 0 : i32
    %c0_i32_0 = arith.constant 0 : i32
    %c0_i32_1 = arith.constant 0 : i32
    return %c0_i32, %c0_i32_0 : i32, i32
  }
  func.func @transform_5(%arg0: i32) -> (i32, i32) {
    %c0_i32 = arith.constant 0 : i32
    %c0_i32_0 = arith.constant 0 : i32
    %c0_i32_1 = arith.constant 0 : i32
    return %c0_i32, %c0_i32_0 : i32, i32
  }
  func.func @transform_6(%arg0: i32) -> (i32, i32) {
    %c0_i32 = arith.constant 0 : i32
    %c0_i32_0 = arith.constant 0 : i32
    %c0_i32_1 = arith.constant 0 : i32
    return %c0_i32, %c0_i32_0 : i32, i32
  }
}

</mosaic_0001>

<llo_original>
// kernel: block_forward.1
$region0: #{block_forward.1}
  #allocation0 [shape = 'u32[]', space=smem, size = 0x4, offset = 0x4, fixed_abs, tag = 'smem constant byte address 0x4 - core index']
  #allocation1 [shape = 'u32[144,128]{1,0:T(1,128)}', space=vmem, size = 0x12000, scoped, tag = 'internal scratch']
  %s0 = inlined_call_operand.vmem [shape: f32[16,32], index: 0, kind: input, shape index: {}]
  %s1 = inlined_call_operand.vmem [shape: f32[1,32], index: 1, kind: input, shape index: {}]
  %s2 = inlined_call_operand.vmem [shape: f32[1,32], index: 2, kind: input, shape index: {}]
  %s3 = inlined_call_operand.vmem [shape: f32[32,96], index: 3, kind: input, shape index: {}]
  %s4 = inlined_call_operand.hbm [shape: f32[32,32], index: 4, kind: input, shape index: {}]
  %s5 = inlined_call_operand.vmem [shape: f32[1,32], index: 5, kind: input, shape index: {}]
  %s6 = inlined_call_operand.vmem [shape: f32[16,32], index: 6, kind: output, shape index: {}]
  %s7 = sld [smem:[#allocation0]]
  $region38: #{block_forward.1} parent=0
    _
  %s9 = ssub.s32 1, %s7
  %s10 = scalar_select 0, %s9, %s7
  $region1: #{block_forward.1} parent=0
    #allocation2 [shape = 'u8[16384]{0}', space=vmem, size = 0x4000, scoped, tag = 'input window, operand 4, single buffered']
    #allocation3 [shape = 's32[1]{0}', space=sflag, size = 0x4, scoped, tag = 'scoped memory for block_forward.1']
    %11 = vsyncpa [#allocation3], 0
    // Predicated region
    $region2: #{block_forward.1} parent=1 // pred_check
      _
    $region3: #{block_forward.1} parent=1 // pred_check_branch
      %13 = sbr.rel (0) target = $region5
    $region4: #{block_forward.1} parent=1 // pred_region
      _
    $region5: #{block_forward.1} parent=1 // pred_fallthru
      _
    // Predicated region
    $region6: #{block_forward.1} parent=1 // pred_check
      _
    $region7: #{block_forward.1} parent=1 // pred_check_branch
      %15 = sbr.rel (0) target = $region9
    $region8: #{block_forward.1} parent=1 // pred_region
      _
    $region9: #{block_forward.1} parent=1 // pred_fallthru
      _
    // Predicated region
    $region10: #{block_forward.1} parent=1 // pred_check
      _
    $region11: #{block_forward.1} parent=1 // pred_check_branch
      %17 = sbr.rel (0) target = $region13
    $region12: #{block_forward.1} parent=1 // pred_region
      _
    $region13: #{block_forward.1} parent=1 // pred_fallthru
      _
    // Predicated region
    $region14: #{block_forward.1} parent=1 // pred_check
      _
    $region15: #{block_forward.1} parent=1 // pred_check_branch
      %19 = sbr.rel (0) target = $region17
    $region16: #{block_forward.1} parent=1 // pred_region
      _
    $region17: #{block_forward.1} parent=1 // pred_fallthru
      _
    // Predicated region
    $region18: #{block_forward.1} parent=1 // pred_check
      _
    $region19: #{block_forward.1} parent=1 // pred_check_branch
      %21 = sbr.rel (0) target = $region21
    $region20: #{block_forward.1} parent=1 // pred_region
      %s23 = ssub.s32 512, 512
      %24 = vsyncadd [#allocation3], %s23
      %s25 = sshll.u32 [#allocation2], 4
      %s26 = int_to_ptr.vmem [resolvable:$true] %s25
      %31 = dma.hbm_to_vmem [thread:$0]  %s4, 512, %s26, [#allocation3], 128, 128, 8
    $region21: #{block_forward.1} parent=1 // pred_fallthru
      _
    // Predicated region
    $region22: #{block_forward.1} parent=1 // pred_check
      _
    $region23: #{block_forward.1} parent=1 // pred_check_branch
      %33 = sbr.rel (0) target = $region25
    $region24: #{block_forward.1} parent=1 // pred_region
      _
    $region25: #{block_forward.1} parent=1 // pred_fallthru
      _
    // Predicated region
    $region26: #{block_forward.1} parent=1 // pred_check
      _
    $region27: #{block_forward.1} parent=1 // pred_check_branch
      %35 = sbr.rel (0) target = $region29
    $region28: #{block_forward.1} parent=1 // pred_region
      %36 = dma.done [#allocation3], 512
    $region29: #{block_forward.1} parent=1 // pred_fallthru
      _
    %v37 = vld [vmem:[%s0] sm:$0xff]
    %v38 = vld [vmem:[%s0 + $0x8] sm:$0xff]
    %vm39 = vcmask 261120
    %v40 = vsel %vm39, %v37, 0.0
    %41 = vadd.xlane.f32.xlu0 %v40
    %v42 = vpop.xlane.xlu0 %41
    %v43 = vsel %vm39, %v38, 0.0
    %44 = vadd.xlane.f32.xlu0 %v43
    %v45 = vpop.xlane.xlu0 %44
    %v46 = vrcp.pop 32.0
    %v47 = vmul.f32 %v42, %v46
    %v48 = vmul.f32 %v45, %v46
    %v49 = vsub.f32 %v37, %v47
    %v50 = vsub.f32 %v38, %v48
    %v51 = vmul.f32 %v49, %v49
    %v52 = vmul.f32 %v50, %v50
    %v53 = vsel %vm39, %v51, 0.0
    %54 = vadd.xlane.f32.xlu0 %v53
    %v55 = vpop.xlane.xlu0 %54
    %v56 = vsel %vm39, %v52, 0.0
    %57 = vadd.xlane.f32.xlu0 %v56
    %v58 = vpop.xlane.xlu0 %57
    %v59 = vmul.f32 %v55, %v46
    %v60 = vmul.f32 %v58, %v46
    %v61 = vadd.f32 %v59, 1e-05
    %v62 = vadd.f32 %v60, 1e-05
    %v63 = vrsqrt.pop %v61
    %v64 = vrsqrt.pop %v62
    %v65 = vmul.f32 %v49, %v63
    %v66 = vmul.f32 %v50, %v64
    %v67 = vld [vmem:[%s1] sm:$0x1]
    %v69 = vlaneseq
    %v70 = vshrl.u32 %v69, 7
    %v71 = vsub.s32 0, %v70
    %v72 = vrot.slane %v67, %v71
    %v74 = vmul.f32 %v65, %v72
    %v75 = vmul.f32 %v66, %v72
    %v76 = vld [vmem:[%s2] sm:$0x1]
    %v78 = vlaneseq
    %v79 = vshrl.u32 %v78, 7
    %v80 = vsub.s32 0, %v79
    %v81 = vrot.slane %v76, %v80
    %v83 = vadd.f32 %v74, %v81
    %v84 = vadd.f32 %v75, %v81
    %v85 = vld [vmem:[%s3] sm:$0xff]
    %v86 = vld [vmem:[%s3 + $0x8] sm:$0xff]
    %v87 = vld [vmem:[%s3 + $0x10] sm:$0xff]
    %v88 = vld [vmem:[%s3 + $0x18] sm:$0xff]
    %v90 = vsel %vm39, %v83, 0
    %v93 = vsel %vm39, %v84, 0
    %95 = vmatprep.subr.mxu0 0.0
    %96 = vmatpush1.msra.mxu0 %v85
    %97 = vmatprep.subr.mxu0 0.0
    %98 = vmatpush1.msra.mxu0 %v86
    %99 = vmatprep.subr.mxu0 0.0
    %100 = vmatpush1.msra.mxu0 %v87
    %101 = vmatprep.subr.mxu0 0.0
    %102 = vmatpush1.msra.mxu0 %v88
    %103 = vmatprep.subr.mxu0 0.0
    %104 = vmatpush1.msra.mxu0 0.0
    %105 = vmatprep.subr.mxu0 0.0
    %106 = vmatpush1.msra.mxu0 0.0
    %107 = vmatprep.subr.mxu0 0.0
    %108 = vmatpush1.msra.mxu0 0.0
    %109 = vmatprep.subr.mxu0 0.0
    %110 = vmatpush1.msra.mxu0 0.0
    %111 = vmatprep.subr.mxu0 0.0
    %112 = vmatpush1.msra.mxu0 0.0
    %113 = vmatprep.subr.mxu0 0.0
    %114 = vmatpush1.msra.mxu0 0.0
    %115 = vmatprep.subr.mxu0 0.0
    %116 = vmatpush1.msra.mxu0 0.0
    %117 = vmatprep.subr.mxu0 0.0
    %118 = vmatpush1.msra.mxu0 0.0
    %119 = vmatprep.subr.mxu0 0.0
    %120 = vmatpush1.msra.mxu0 0.0
    %121 = vmatprep.subr.mxu0 0.0
    %122 = vmatpush1.msra.mxu0 0.0
    %123 = vmatprep.subr.mxu0 0.0
    %124 = vmatpush1.msra.mxu0 0.0
    %125 = vmatprep.subr.mxu0 0.0
    %126 = vmatpush1.msra.mxu0 0.0
    %127 = vmatprep.subr.mxu0 0.0
    %128 = vmatpush1.msra.mxu0 0.0
    %129 = vmatprep.subr.mxu0 0.0
    %130 = vmatpush1.msra.mxu0 0.0
    %131 = vmatprep.subr.mxu0 0.0
    %132 = vmatpush1.msra.mxu0 0.0
    %133 = vmatprep.subr.mxu0 0.0
    %134 = vmatpush1.msra.mxu0 0.0
    %135 = vmatprep.subr.mxu0 0.0
    %136 = vmatpush1.msra.mxu0 0.0
    %137 = vmatprep.subr.mxu0 0.0
    %138 = vmatpush1.msra.mxu0 0.0
    %139 = vmatprep.subr.mxu0 0.0
    %140 = vmatpush1.msra.mxu0 0.0
    %141 = vmatprep.subr.mxu0 0.0
    %142 = vmatpush1.msra.mxu0 0.0
    %143 = vmatprep.subr.mxu0 0.0
    %144 = vmatpush1.msra.mxu0 0.0
    %145 = vmatprep.subr.mxu0 0.0
    %146 = vmatpush1.msra.mxu0 0.0
    %147 = vmatprep.subr.mxu0 0.0
    %148 = vmatpush1.msra.mxu0 0.0
    %149 = vmatprep.subr.mxu0 0.0
    %150 = vmatpush1.msra.mxu0 0.0
    %151 = vmatprep.subr.mxu0 0.0
    %152 = vmatpush1.msra.mxu0 0.0
    %153 = vmatprep.subr.mxu0 0.0
    %154 = vmatpush1.msra.mxu0 0.0
    %155 = vmatprep.subr.mxu0 0.0
    %156 = vmatpush1.msra.mxu0 0.0
    %157 = vmatprep.subr.mxu0 0.0
    %158 = vmatpush1.msra.mxu0 0.0
    %159 = vmatprep.mubr.f32.mxu0 0.0
    %160 = vmatmul.mubr.f32.gmra.mrb[0].mxu0 %v90
    %v161 = vpop.f32.mrb[0].mxu0
    %v162 = vadd.f32 0.0, %v161
    %v163 = vpop.f32.mrb[0].mxu0
    %164 = vmatprep.mubr.f32.mxu0 0.0
    %165 = vmatmul.mubr.f32.gmra.mrb[0].mxu0 %v93
    %v166 = vpop.f32.mrb[0].mxu0
    %v167 = vadd.f32 0.0, %v166
    %v168 = vpop.f32.mrb[0].mxu0
    %169 = vdwg.mxu0
    %171 = vrot.lane.b32.xlu0 %v162, 96
    %v172 = vpop.permute.xlu0 %171
    %vm173 = vcmask 64512
    %v174 = vsel %vm173, %v162, 0
    %v176 = vsel %vm173, %v172, 0
    %178 = vmatprep.subr.mxu0 0.0
    %179 = vmatpush1.xpose.msra.mxu0 %v176
    %180 = vmatprep.subr.mxu0 0.0
    %181 = vmatpush1.xpose.msra.mxu0 0.0
    %182 = vmatprep.subr.mxu0 0.0
    %183 = vmatpush1.xpose.msra.mxu0 0.0
    %184 = vmatprep.subr.mxu0 0.0
    %185 = vmatpush1.xpose.msra.mxu0 0.0
    %186 = vmatprep.subr.mxu0 0.0
    %187 = vmatpush1.xpose.msra.mxu0 0.0
    %188 = vmatprep.subr.mxu0 0.0
    %189 = vmatpush1.xpose.msra.mxu0 0.0
    %190 = vmatprep.subr.mxu0 0.0
    %191 = vmatpush1.xpose.msra.mxu0 0.0
    %192 = vmatprep.subr.mxu0 0.0
    %193 = vmatpush1.xpose.msra.mxu0 0.0
    %194 = vmatprep.subr.mxu0 0.0
    %195 = vmatpush1.xpose.msra.mxu0 0.0
    %196 = vmatprep.subr.mxu0 0.0
    %197 = vmatpush1.xpose.msra.mxu0 0.0
    %198 = vmatprep.subr.mxu0 0.0
    %199 = vmatpush1.xpose.msra.mxu0 0.0
    %200 = vmatprep.subr.mxu0 0.0
    %201 = vmatpush1.xpose.msra.mxu0 0.0
    %202 = vmatprep.subr.mxu0 0.0
    %203 = vmatpush1.xpose.msra.mxu0 0.0
    %204 = vmatprep.subr.mxu0 0.0
    %205 = vmatpush1.xpose.msra.mxu0 0.0
    %206 = vmatprep.subr.mxu0 0.0
    %207 = vmatpush1.xpose.msra.mxu0 0.0
    %208 = vmatprep.subr.mxu0 0.0
    %209 = vmatpush1.xpose.msra.mxu0 0.0
    %210 = vmatprep.subr.mxu0 0.0
    %211 = vmatpush1.xpose.msra.mxu0 0.0
    %212 = vmatprep.subr.mxu0 0.0
    %213 = vmatpush1.xpose.msra.mxu0 0.0
    %214 = vmatprep.subr.mxu0 0.0
    %215 = vmatpush1.xpose.msra.mxu0 0.0
    %216 = vmatprep.subr.mxu0 0.0
    %217 = vmatpush1.xpose.msra.mxu0 0.0
    %218 = vmatprep.subr.mxu0 0.0
    %219 = vmatpush1.xpose.msra.mxu0 0.0
    %220 = vmatprep.subr.mxu0 0.0
    %221 = vmatpush1.xpose.msra.mxu0 0.0
    %222 = vmatprep.subr.mxu0 0.0
    %223 = vmatpush1.xpose.msra.mxu0 0.0
    %224 = vmatprep.subr.mxu0 0.0
    %225 = vmatpush1.xpose.msra.mxu0 0.0
    %226 = vmatprep.subr.mxu0 0.0
    %227 = vmatpush1.xpose.msra.mxu0 0.0
    %228 = vmatprep.subr.mxu0 0.0
    %229 = vmatpush1.xpose.msra.mxu0 0.0
    %230 = vmatprep.subr.mxu0 0.0
    %231 = vmatpush1.xpose.msra.mxu0 0.0
    %232 = vmatprep.subr.mxu0 0.0
    %233 = vmatpush1.xpose.msra.mxu0 0.0
    %234 = vmatprep.subr.mxu0 0.0
    %235 = vmatpush1.xpose.msra.mxu0 0.0
    %236 = vmatprep.subr.mxu0 0.0
    %237 = vmatpush1.xpose.msra.mxu0 0.0
    %238 = vmatprep.subr.mxu0 0.0
    %239 = vmatpush1.xpose.msra.mxu0 0.0
    %240 = vmatprep.subr.mxu0 0.0
    %241 = vmatpush1.xpose.msra.mxu0 0.0
    %242 = vmatprep.mubr.f32.mxu0 0.0
    %243 = vmatmul.mubr.f32.gmra.mrb[0].mxu0 %v174
    %v244 = vpop.f32.mrb[0].mxu0
    %v245 = vadd.f32 0.0, %v244
    %v246 = vpop.f32.mrb[0].mxu0
    %247 = vdwg.mxu0
    %v248 = vmul.f32 %v245, 0.35355338
    %v249 = vsel %vm173, %v248, -inf
    %250 = vmax.xlane.f32.xlu0 %v249
    %v251 = vpop.xlane.xlu0 %250
    %v252 = vsub.f32 %v248, %v251
    %v253 = vmul.f32 %v252, 1.442695
    %v254 = vpow.pop %v253
    %v255 = vsel %vm173, %v254, 0.0
    %256 = vadd.xlane.f32.xlu0 %v255
    %v257 = vpop.xlane.xlu0 %256
    %v258 = vrcp.pop %v257
    %v259 = vmul.f32 %v254, %v258
    %260 = vrot.lane.b32.xlu0 %v162, 64
    %v261 = vpop.permute.xlu0 %260
    %v264 = vsel %vm173, %v259, 0
    %266 = vmatprep.subr.mxu0 0.0
    %267 = vmatpush1.msra.mxu0 %v261
    %268 = vmatprep.subr.mxu0 0.0
    %269 = vmatpush1.msra.mxu0 0.0
    %270 = vmatprep.subr.mxu0 0.0
    %271 = vmatpush1.msra.mxu0 0.0
    %272 = vmatprep.subr.mxu0 0.0
    %273 = vmatpush1.msra.mxu0 0.0
    %274 = vmatprep.subr.mxu0 0.0
    %275 = vmatpush1.msra.mxu0 0.0
    %276 = vmatprep.subr.mxu0 0.0
    %277 = vmatpush1.msra.mxu0 0.0
    %278 = vmatprep.subr.mxu0 0.0
    %279 = vmatpush1.msra.mxu0 0.0
    %280 = vmatprep.subr.mxu0 0.0
    %281 = vmatpush1.msra.mxu0 0.0
    %282 = vmatprep.subr.mxu0 0.0
    %283 = vmatpush1.msra.mxu0 0.0
    %284 = vmatprep.subr.mxu0 0.0
    %285 = vmatpush1.msra.mxu0 0.0
    %286 = vmatprep.subr.mxu0 0.0
    %287 = vmatpush1.msra.mxu0 0.0
    %288 = vmatprep.subr.mxu0 0.0
    %289 = vmatpush1.msra.mxu0 0.0
    %290 = vmatprep.subr.mxu0 0.0
    %291 = vmatpush1.msra.mxu0 0.0
    %292 = vmatprep.subr.mxu0 0.0
    %293 = vmatpush1.msra.mxu0 0.0
    %294 = vmatprep.subr.mxu0 0.0
    %295 = vmatpush1.msra.mxu0 0.0
    %296 = vmatprep.subr.mxu0 0.0
    %297 = vmatpush1.msra.mxu0 0.0
    %298 = vmatprep.subr.mxu0 0.0
    %299 = vmatpush1.msra.mxu0 0.0
    %300 = vmatprep.subr.mxu0 0.0
    %301 = vmatpush1.msra.mxu0 0.0
    %302 = vmatprep.subr.mxu0 0.0
    %303 = vmatpush1.msra.mxu0 0.0
    %304 = vmatprep.subr.mxu0 0.0
    %305 = vmatpush1.msra.mxu0 0.0
    %306 = vmatprep.subr.mxu0 0.0
    %307 = vmatpush1.msra.mxu0 0.0
    %308 = vmatprep.subr.mxu0 0.0
    %309 = vmatpush1.msra.mxu0 0.0
    %310 = vmatprep.subr.mxu0 0.0
    %311 = vmatpush1.msra.mxu0 0.0
    %312 = vmatprep.subr.mxu0 0.0
    %313 = vmatpush1.msra.mxu0 0.0
    %314 = vmatprep.subr.mxu0 0.0
    %315 = vmatpush1.msra.mxu0 0.0
    %316 = vmatprep.subr.mxu0 0.0
    %317 = vmatpush1.msra.mxu0 0.0
    %318 = vmatprep.subr.mxu0 0.0
    %319 = vmatpush1.msra.mxu0 0.0
    %320 = vmatprep.subr.mxu0 0.0
    %321 = vmatpush1.msra.mxu0 0.0
    %322 = vmatprep.subr.mxu0 0.0
    %323 = vmatpush1.msra.mxu0 0.0
    %324 = vmatprep.subr.mxu0 0.0
    %325 = vmatpush1.msra.mxu0 0.0
    %326 = vmatprep.subr.mxu0 0.0
    %327 = vmatpush1.msra.mxu0 0.0
    %328 = vmatprep.subr.mxu0 0.0
    %329 = vmatpush1.msra.mxu0 0.0
    %330 = vmatprep.mubr.f32.mxu0 0.0
    %331 = vmatmul.mubr.f32.gmra.mrb[0].mxu0 %v264
    %v332 = vpop.f32.mrb[0].mxu0
    %v333 = vadd.f32 0.0, %v332
    %v334 = vpop.f32.mrb[0].mxu0
    %335 = vdwg.mxu0
    %336 = vrot.lane.b32.xlu0 %v162, 120
    %v337 = vpop.permute.xlu0 %336
    %338 = vrot.lane.b32.xlu0 %v162, 88
    %v339 = vpop.permute.xlu0 %338
    %v340 = vsel %vm173, %v337, 0
    %v342 = vsel %vm173, %v339, 0
    %344 = vmatprep.subr.mxu0 0.0
    %345 = vmatpush1.xpose.msra.mxu0 %v342
    %346 = vmatprep.subr.mxu0 0.0
    %347 = vmatpush1.xpose.msra.mxu0 0.0
    %348 = vmatprep.subr.mxu0 0.0
    %349 = vmatpush1.xpose.msra.mxu0 0.0
    %350 = vmatprep.subr.mxu0 0.0
    %351 = vmatpush1.xpose.msra.mxu0 0.0
    %352 = vmatprep.subr.mxu0 0.0
    %353 = vmatpush1.xpose.msra.mxu0 0.0
    %354 = vmatprep.subr.mxu0 0.0
    %355 = vmatpush1.xpose.msra.mxu0 0.0
    %356 = vmatprep.subr.mxu0 0.0
    %357 = vmatpush1.xpose.msra.mxu0 0.0
    %358 = vmatprep.subr.mxu0 0.0
    %359 = vmatpush1.xpose.msra.mxu0 0.0
    %360 = vmatprep.subr.mxu0 0.0
    %361 = vmatpush1.xpose.msra.mxu0 0.0
    %362 = vmatprep.subr.mxu0 0.0
    %363 = vmatpush1.xpose.msra.mxu0 0.0
    %364 = vmatprep.subr.mxu0 0.0
    %365 = vmatpush1.xpose.msra.mxu0 0.0
    %366 = vmatprep.subr.mxu0 0.0
    %367 = vmatpush1.xpose.msra.mxu0 0.0
    %368 = vmatprep.subr.mxu0 0.0
    %369 = vmatpush1.xpose.msra.mxu0 0.0
    %370 = vmatprep.subr.mxu0 0.0
    %371 = vmatpush1.xpose.msra.mxu0 0.0
    %372 = vmatprep.subr.mxu0 0.0
    %373 = vmatpush1.xpose.msra.mxu0 0.0
    %374 = vmatprep.subr.mxu0 0.0
    %375 = vmatpush1.xpose.msra.mxu0 0.0
    %376 = vmatprep.subr.mxu0 0.0
    %377 = vmatpush1.xpose.msra.mxu0 0.0
    %378 = vmatprep.subr.mxu0 0.0
    %379 = vmatpush1.xpose.msra.mxu0 0.0
    %380 = vmatprep.subr.mxu0 0.0
    %381 = vmatpush1.xpose.msra.mxu0 0.0
    %382 = vmatprep.subr.mxu0 0.0
    %383 = vmatpush1.xpose.msra.mxu0 0.0
    %384 = vmatprep.subr.mxu0 0.0
    %385 = vmatpush1.xpose.msra.mxu0 0.0
    %386 = vmatprep.subr.mxu0 0.0
    %387 = vmatpush1.xpose.msra.mxu0 0.0
    %388 = vmatprep.subr.mxu0 0.0
    %389 = vmatpush1.xpose.msra.mxu0 0.0
    %390 = vmatprep.subr.mxu0 0.0
    %391 = vmatpush1.xpose.msra.mxu0 0.0
    %392 = vmatprep.subr.mxu0 0.0
    %393 = vmatpush1.xpose.msra.mxu0 0.0
    %394 = vmatprep.subr.mxu0 0.0
    %395 = vmatpush1.xpose.msra.mxu0 0.0
    %396 = vmatprep.subr.mxu0 0.0
    %397 = vmatpush1.xpose.msra.mxu0 0.0
    %398 = vmatprep.subr.mxu0 0.0
    %399 = vmatpush1.xpose.msra.mxu0 0.0
    %400 = vmatprep.subr.mxu0 0.0
    %401 = vmatpush1.xpose.msra.mxu0 0.0
    %402 = vmatprep.subr.mxu0 0.0
    %403 = vmatpush1.xpose.msra.mxu0 0.0
    %404 = vmatprep.subr.mxu0 0.0
    %405 = vmatpush1.xpose.msra.mxu0 0.0
    %406 = vmatprep.subr.mxu0 0.0
    %407 = vmatpush1.xpose.msra.mxu0 0.0
    %408 = vmatprep.mubr.f32.mxu0 0.0
    %409 = vmatmul.mubr.f32.gmra.mrb[0].mxu0 %v340
    %v410 = vpop.f32.mrb[0].mxu0
    %v411 = vadd.f32 0.0, %v410
    %v412 = vpop.f32.mrb[0].mxu0
    %413 = vdwg.mxu0
    %v414 = vmul.f32 %v411, 0.35355338
    %v415 = vsel %vm173, %v414, -inf
    %416 = vmax.xlane.f32.xlu0 %v415
    %v417 = vpop.xlane.xlu0 %416
    %v418 = vsub.f32 %v414, %v417
    %v419 = vmul.f32 %v418, 1.442695
    %v420 = vpow.pop %v419
    %v421 = vsel %vm173, %v420, 0.0
    %422 = vadd.xlane.f32.xlu0 %v421
    %v423 = vpop.xlane.xlu0 %422
    %v424 = vrcp.pop %v423
    %v425 = vmul.f32 %v420, %v424
    %426 = vrot.lane.b32.xlu0 %v162, 56
    %v427 = vpop.permute.xlu0 %426
    %v430 = vsel %vm173, %v425, 0
    %432 = vmatprep.subr.mxu0 0.0
    %433 = vmatpush1.msra.mxu0 %v427
    %434 = vmatprep.subr.mxu0 0.0
    %435 = vmatpush1.msra.mxu0 0.0
    %436 = vmatprep.subr.mxu0 0.0
    %437 = vmatpush1.msra.mxu0 0.0
    %438 = vmatprep.subr.mxu0 0.0
    %439 = vmatpush1.msra.mxu0 0.0
    %440 = vmatprep.subr.mxu0 0.0
    %441 = vmatpush1.msra.mxu0 0.0
    %442 = vmatprep.subr.mxu0 0.0
    %443 = vmatpush1.msra.mxu0 0.0
    %444 = vmatprep.subr.mxu0 0.0
    %445 = vmatpush1.msra.mxu0 0.0
    %446 = vmatprep.subr.mxu0 0.0
    %447 = vmatpush1.msra.mxu0 0.0
    %448 = vmatprep.subr.mxu0 0.0
    %449 = vmatpush1.msra.mxu0 0.0
    %450 = vmatprep.subr.mxu0 0.0
    %451 = vmatpush1.msra.mxu0 0.0
    %452 = vmatprep.subr.mxu0 0.0
    %453 = vmatpush1.msra.mxu0 0.0
    %454 = vmatprep.subr.mxu0 0.0
    %455 = vmatpush1.msra.mxu0 0.0
    %456 = vmatprep.subr.mxu0 0.0
    %457 = vmatpush1.msra.mxu0 0.0
    %458 = vmatprep.subr.mxu0 0.0
    %459 = vmatpush1.msra.mxu0 0.0
    %460 = vmatprep.subr.mxu0 0.0
    %461 = vmatpush1.msra.mxu0 0.0
    %462 = vmatprep.subr.mxu0 0.0
    %463 = vmatpush1.msra.mxu0 0.0
    %464 = vmatprep.subr.mxu0 0.0
    %465 = vmatpush1.msra.mxu0 0.0
    %466 = vmatprep.subr.mxu0 0.0
    %467 = vmatpush1.msra.mxu0 0.0
    %468 = vmatprep.subr.mxu0 0.0
    %469 = vmatpush1.msra.mxu0 0.0
    %470 = vmatprep.subr.mxu0 0.0
    %471 = vmatpush1.msra.mxu0 0.0
    %472 = vmatprep.subr.mxu0 0.0
    %473 = vmatpush1.msra.mxu0 0.0
    %474 = vmatprep.subr.mxu0 0.0
    %475 = vmatpush1.msra.mxu0 0.0
    %476 = vmatprep.subr.mxu0 0.0
    %477 = vmatpush1.msra.mxu0 0.0
    %478 = vmatprep.subr.mxu0 0.0
    %479 = vmatpush1.msra.mxu0 0.0
    %480 = vmatprep.subr.mxu0 0.0
    %481 = vmatpush1.msra.mxu0 0.0
    %482 = vmatprep.subr.mxu0 0.0
    %483 = vmatpush1.msra.mxu0 0.0
    %484 = vmatprep.subr.mxu0 0.0
    %485 = vmatpush1.msra.mxu0 0.0
    %486 = vmatprep.subr.mxu0 0.0
    %487 = vmatpush1.msra.mxu0 0.0
    %488 = vmatprep.subr.mxu0 0.0
    %489 = vmatpush1.msra.mxu0 0.0
    %490 = vmatprep.subr.mxu0 0.0
    %491 = vmatpush1.msra.mxu0 0.0
    %492 = vmatprep.subr.mxu0 0.0
    %493 = vmatpush1.msra.mxu0 0.0
    %494 = vmatprep.subr.mxu0 0.0
    %495 = vmatpush1.msra.mxu0 0.0
    %496 = vmatprep.mubr.f32.mxu0 0.0
    %497 = vmatmul.mubr.f32.gmra.mrb[0].mxu0 %v430
    %v498 = vpop.f32.mrb[0].mxu0
    %v499 = vadd.f32 0.0, %v498
    %v500 = vpop.f32.mrb[0].mxu0
    %501 = vdwg.mxu0
    %502 = vrot.lane.b32.xlu0 %v162, 112
    %v503 = vpop.permute.xlu0 %502
    %504 = vrot.lane.b32.xlu0 %v162, 80
    %v505 = vpop.permute.xlu0 %504
    %v506 = vsel %vm173, %v503, 0
    %v508 = vsel %vm173, %v505, 0
    %510 = vmatprep.subr.mxu0 0.0
    %511 = vmatpush1.xpose.msra.mxu0 %v508
    %512 = vmatprep.subr.mxu0 0.0
    %513 = vmatpush1.xpose.msra.mxu0 0.0
    %514 = vmatprep.subr.mxu0 0.0
    %515 = vmatpush1.xpose.msra.mxu0 0.0
    %516 = vmatprep.subr.mxu0 0.0
    %517 = vmatpush1.xpose.msra.mxu0 0.0
    %518 = vmatprep.subr.mxu0 0.0
    %519 = vmatpush1.xpose.msra.mxu0 0.0
    %520 = vmatprep.subr.mxu0 0.0
    %521 = vmatpush1.xpose.msra.mxu0 0.0
    %522 = vmatprep.subr.mxu0 0.0
    %523 = vmatpush1.xpose.msra.mxu0 0.0
    %524 = vmatprep.subr.mxu0 0.0
    %525 = vmatpush1.xpose.msra.mxu0 0.0
    %526 = vmatprep.subr.mxu0 0.0
    %527 = vmatpush1.xpose.msra.mxu0 0.0
    %528 = vmatprep.subr.mxu0 0.0
    %529 = vmatpush1.xpose.msra.mxu0 0.0
    %530 = vmatprep.subr.mxu0 0.0
    %531 = vmatpush1.xpose.msra.mxu0 0.0
    %532 = vmatprep.subr.mxu0 0.0
    %533 = vmatpush1.xpose.msra.mxu0 0.0
    %534 = vmatprep.subr.mxu0 0.0
    %535 = vmatpush1.xpose.msra.mxu0 0.0
    %536 = vmatprep.subr.mxu0 0.0
    %537 = vmatpush1.xpose.msra.mxu0 0.0
    %538 = vmatprep.subr.mxu0 0.0
    %539 = vmatpush1.xpose.msra.mxu0 0.0
    %540 = vmatprep.subr.mxu0 0.0
    %541 = vmatpush1.xpose.msra.mxu0 0.0
    %542 = vmatprep.subr.mxu0 0.0
    %543 = vmatpush1.xpose.msra.mxu0 0.0
    %544 = vmatprep.subr.mxu0 0.0
    %545 = vmatpush1.xpose.msra.mxu0 0.0
    %546 = vmatprep.subr.mxu0 0.0
    %547 = vmatpush1.xpose.msra.mxu0 0.0
    %548 = vmatprep.subr.mxu0 0.0
    %549 = vmatpush1.xpose.msra.mxu0 0.0
    %550 = vmatprep.subr.mxu0 0.0
    %551 = vmatpush1.xpose.msra.mxu0 0.0
    %552 = vmatprep.subr.mxu0 0.0
    %553 = vmatpush1.xpose.msra.mxu0 0.0
    %554 = vmatprep.subr.mxu0 0.0
    %555 = vmatpush1.xpose.msra.mxu0 0.0
    %556 = vmatprep.subr.mxu0 0.0
    %557 = vmatpush1.xpose.msra.mxu0 0.0
    %558 = vmatprep.subr.mxu0 0.0
    %559 = vmatpush1.xpose.msra.mxu0 0.0
    %560 = vmatprep.subr.mxu0 0.0
    %561 = vmatpush1.xpose.msra.mxu0 0.0
    %562 = vmatprep.subr.mxu0 0.0
    %563 = vmatpush1.xpose.msra.mxu0 0.0
    %564 = vmatprep.subr.mxu0 0.0
    %565 = vmatpush1.xpose.msra.mxu0 0.0
    %566 = vmatprep.subr.mxu0 0.0
    %567 = vmatpush1.xpose.msra.mxu0 0.0
    %568 = vmatprep.subr.mxu0 0.0
    %569 = vmatpush1.xpose.msra.mxu0 0.0
    %570 = vmatprep.subr.mxu0 0.0
    %571 = vmatpush1.xpose.msra.mxu0 0.0
    %572 = vmatprep.subr.mxu0 0.0
    %573 = vmatpush1.xpose.msra.mxu0 0.0
    %574 = vmatprep.mubr.f32.mxu0 0.0
    %575 = vmatmul.mubr.f32.gmra.mrb[0].mxu0 %v506
    %v576 = vpop.f32.mrb[0].mxu0
    %v577 = vadd.f32 0.0, %v576
    %v578 = vpop.f32.mrb[0].mxu0
    %579 = vdwg.mxu0
    %v580 = vmul.f32 %v577, 0.35355338
    %v581 = vsel %vm173, %v580, -inf
    %582 = vmax.xlane.f32.xlu0 %v581
    %v583 = vpop.xlane.xlu0 %582
    %v584 = vsub.f32 %v580, %v583
    %v585 = vmul.f32 %v584, 1.442695
    %v586 = vpow.pop %v585
    %v587 = vsel %vm173, %v586, 0.0
    %588 = vadd.xlane.f32.xlu0 %v587
    %v589 = vpop.xlane.xlu0 %588
    %v590 = vrcp.pop %v589
    %v591 = vmul.f32 %v586, %v590
    %592 = vrot.lane.b32.xlu0 %v162, 48
    %v593 = vpop.permute.xlu0 %592
    %v596 = vsel %vm173, %v591, 0
    %598 = vmatprep.subr.mxu0 0.0
    %599 = vmatpush1.msra.mxu0 %v593
    %600 = vmatprep.subr.mxu0 0.0
    %601 = vmatpush1.msra.mxu0 0.0
    %602 = vmatprep.subr.mxu0 0.0
    %603 = vmatpush1.msra.mxu0 0.0
    %604 = vmatprep.subr.mxu0 0.0
    %605 = vmatpush1.msra.mxu0 0.0
    %606 = vmatprep.subr.mxu0 0.0
    %607 = vmatpush1.msra.mxu0 0.0
    %608 = vmatprep.subr.mxu0 0.0
    %609 = vmatpush1.msra.mxu0 0.0
    %610 = vmatprep.subr.mxu0 0.0
    %611 = vmatpush1.msra.mxu0 0.0
    %612 = vmatprep.subr.mxu0 0.0
    %613 = vmatpush1.msra.mxu0 0.0
    %614 = vmatprep.subr.mxu0 0.0
    %615 = vmatpush1.msra.mxu0 0.0
    %616 = vmatprep.subr.mxu0 0.0
    %617 = vmatpush1.msra.mxu0 0.0
    %618 = vmatprep.subr.mxu0 0.0
    %619 = vmatpush1.msra.mxu0 0.0
    %620 = vmatprep.subr.mxu0 0.0
    %621 = vmatpush1.msra.mxu0 0.0
    %622 = vmatprep.subr.mxu0 0.0
    %623 = vmatpush1.msra.mxu0 0.0
    %624 = vmatprep.subr.mxu0 0.0
    %625 = vmatpush1.msra.mxu0 0.0
    %626 = vmatprep.subr.mxu0 0.0
    %627 = vmatpush1.msra.mxu0 0.0
    %628 = vmatprep.subr.mxu0 0.0
    %629 = vmatpush1.msra.mxu0 0.0
    %630 = vmatprep.subr.mxu0 0.0
    %631 = vmatpush1.msra.mxu0 0.0
    %632 = vmatprep.subr.mxu0 0.0
    %633 = vmatpush1.msra.mxu0 0.0
    %634 = vmatprep.subr.mxu0 0.0
    %635 = vmatpush1.msra.mxu0 0.0
    %636 = vmatprep.subr.mxu0 0.0
    %637 = vmatpush1.msra.mxu0 0.0
    %638 = vmatprep.subr.mxu0 0.0
    %639 = vmatpush1.msra.mxu0 0.0
    %640 = vmatprep.subr.mxu0 0.0
    %641 = vmatpush1.msra.mxu0 0.0
    %642 = vmatprep.subr.mxu0 0.0
    %643 = vmatpush1.msra.mxu0 0.0
    %644 = vmatprep.subr.mxu0 0.0
    %645 = vmatpush1.msra.mxu0 0.0
    %646 = vmatprep.subr.mxu0 0.0
    %647 = vmatpush1.msra.mxu0 0.0
    %648 = vmatprep.subr.mxu0 0.0
    %649 = vmatpush1.msra.mxu0 0.0
    %650 = vmatprep.subr.mxu0 0.0
    %651 = vmatpush1.msra.mxu0 0.0
    %652 = vmatprep.subr.mxu0 0.0
    %653 = vmatpush1.msra.mxu0 0.0
    %654 = vmatprep.subr.mxu0 0.0
    %655 = vmatpush1.msra.mxu0 0.0
    %656 = vmatprep.subr.mxu0 0.0
    %657 = vmatpush1.msra.mxu0 0.0
    %658 = vmatprep.subr.mxu0 0.0
    %659 = vmatpush1.msra.mxu0 0.0
    %660 = vmatprep.subr.mxu0 0.0
    %661 = vmatpush1.msra.mxu0 0.0
    %662 = vmatprep.mubr.f32.mxu0 0.0
    %663 = vmatmul.mubr.f32.gmra.mrb[0].mxu0 %v596
    %v664 = vpop.f32.mrb[0].mxu0
    %v665 = vadd.f32 0.0, %v664
    %v666 = vpop.f32.mrb[0].mxu0
    %667 = vdwg.mxu0
    %668 = vrot.lane.b32.xlu0 %v162, 104
    %v669 = vpop.permute.xlu0 %668
    %670 = vrot.lane.b32.xlu0 %v162, 72
    %v671 = vpop.permute.xlu0 %670
    %v672 = vsel %vm173, %v669, 0
    %v674 = vsel %vm173, %v671, 0
    %676 = vmatprep.subr.mxu0 0.0
    %677 = vmatpush1.xpose.msra.mxu0 %v674
    %678 = vmatprep.subr.mxu0 0.0
    %679 = vmatpush1.xpose.msra.mxu0 0.0
    %680 = vmatprep.subr.mxu0 0.0
    %681 = vmatpush1.xpose.msra.mxu0 0.0
    %682 = vmatprep.subr.mxu0 0.0
    %683 = vmatpush1.xpose.msra.mxu0 0.0
    %684 = vmatprep.subr.mxu0 0.0
    %685 = vmatpush1.xpose.msra.mxu0 0.0
    %686 = vmatprep.subr.mxu0 0.0
    %687 = vmatpush1.xpose.msra.mxu0 0.0
    %688 = vmatprep.subr.mxu0 0.0
    %689 = vmatpush1.xpose.msra.mxu0 0.0
    %690 = vmatprep.subr.mxu0 0.0
    %691 = vmatpush1.xpose.msra.mxu0 0.0
    %692 = vmatprep.subr.mxu0 0.0
    %693 = vmatpush1.xpose.msra.mxu0 0.0
    %694 = vmatprep.subr.mxu0 0.0
    %695 = vmatpush1.xpose.msra.mxu0 0.0
    %696 = vmatprep.subr.mxu0 0.0
    %697 = vmatpush1.xpose.msra.mxu0 0.0
    %698 = vmatprep.subr.mxu0 0.0
    %699 = vmatpush1.xpose.msra.mxu0 0.0
    %700 = vmatprep.subr.mxu0 0.0
    %701 = vmatpush1.xpose.msra.mxu0 0.0
    %702 = vmatprep.subr.mxu0 0.0
    %703 = vmatpush1.xpose.msra.mxu0 0.0
    %704 = vmatprep.subr.mxu0 0.0
    %705 = vmatpush1.xpose.msra.mxu0 0.0
    %706 = vmatprep.subr.mxu0 0.0
    %707 = vmatpush1.xpose.msra.mxu0 0.0
    %708 = vmatprep.subr.mxu0 0.0
    %709 = vmatpush1.xpose.msra.mxu0 0.0
    %710 = vmatprep.subr.mxu0 0.0
    %711 = vmatpush1.xpose.msra.mxu0 0.0
    %712 = vmatprep.subr.mxu0 0.0
    %713 = vmatpush1.xpose.msra.mxu0 0.0
    %714 = vmatprep.subr.mxu0 0.0
    %715 = vmatpush1.xpose.msra.mxu0 0.0
    %716 = vmatprep.subr.mxu0 0.0
    %717 = vmatpush1.xpose.msra.mxu0 0.0
    %718 = vmatprep.subr.mxu0 0.0
    %719 = vmatpush1.xpose.msra.mxu0 0.0
    %720 = vmatprep.subr.mxu0 0.0
    %721 = vmatpush1.xpose.msra.mxu0 0.0
    %722 = vmatprep.subr.mxu0 0.0
    %723 = vmatpush1.xpose.msra.mxu0 0.0
    %724 = vmatprep.subr.mxu0 0.0
    %725 = vmatpush1.xpose.msra.mxu0 0.0
    %726 = vmatprep.subr.mxu0 0.0
    %727 = vmatpush1.xpose.msra.mxu0 0.0
    %728 = vmatprep.subr.mxu0 0.0
    %729 = vmatpush1.xpose.msra.mxu0 0.0
    %730 = vmatprep.subr.mxu0 0.0
    %731 = vmatpush1.xpose.msra.mxu0 0.0
    %732 = vmatprep.subr.mxu0 0.0
    %733 = vmatpush1.xpose.msra.mxu0 0.0
    %734 = vmatprep.subr.mxu0 0.0
    %735 = vmatpush1.xpose.msra.mxu0 0.0
    %736 = vmatprep.subr.mxu0 0.0
    %737 = vmatpush1.xpose.msra.mxu0 0.0
    %738 = vmatprep.subr.mxu0 0.0
    %739 = vmatpush1.xpose.msra.mxu0 0.0
    %740 = vmatprep.mubr.f32.mxu0 0.0
    %741 = vmatmul.mubr.f32.gmra.mrb[0].mxu0 %v672
    %v742 = vpop.f32.mrb[0].mxu0
    %v743 = vadd.f32 0.0, %v742
    %v744 = vpop.f32.mrb[0].mxu0
    %745 = vdwg.mxu0
    %v746 = vmul.f32 %v743, 0.35355338
    %v747 = vsel %vm173, %v746, -inf
    %748 = vmax.xlane.f32.xlu0 %v747
    %v749 = vpop.xlane.xlu0 %748
    %v750 = vsub.f32 %v746, %v749
    %v751 = vmul.f32 %v750, 1.442695
    %v752 = vpow.pop %v751
    %v753 = vsel %vm173, %v752, 0.0
    %754 = vadd.xlane.f32.xlu0 %v753
    %v755 = vpop.xlane.xlu0 %754
    %v756 = vrcp.pop %v755
    %v757 = vmul.f32 %v752, %v756
    %758 = vrot.lane.b32.xlu0 %v162, 40
    %v759 = vpop.permute.xlu0 %758
    %v762 = vsel %vm173, %v757, 0
    %764 = vmatprep.subr.mxu0 0.0
    %765 = vmatpush1.msra.mxu0 %v759
    %766 = vmatprep.subr.mxu0 0.0
    %767 = vmatpush1.msra.mxu0 0.0
    %768 = vmatprep.subr.mxu0 0.0
    %769 = vmatpush1.msra.mxu0 0.0
    %770 = vmatprep.subr.mxu0 0.0
    %771 = vmatpush1.msra.mxu0 0.0
    %772 = vmatprep.subr.mxu0 0.0
    %773 = vmatpush1.msra.mxu0 0.0
    %774 = vmatprep.subr.mxu0 0.0
    %775 = vmatpush1.msra.mxu0 0.0
    %776 = vmatprep.subr.mxu0 0.0
    %777 = vmatpush1.msra.mxu0 0.0
    %778 = vmatprep.subr.mxu0 0.0
    %779 = vmatpush1.msra.mxu0 0.0
    %780 = vmatprep.subr.mxu0 0.0
    %781 = vmatpush1.msra.mxu0 0.0
    %782 = vmatprep.subr.mxu0 0.0
    %783 = vmatpush1.msra.mxu0 0.0
    %784 = vmatprep.subr.mxu0 0.0
    %785 = vmatpush1.msra.mxu0 0.0
    %786 = vmatprep.subr.mxu0 0.0
    %787 = vmatpush1.msra.mxu0 0.0
    %788 = vmatprep.subr.mxu0 0.0
    %789 = vmatpush1.msra.mxu0 0.0
    %790 = vmatprep.subr.mxu0 0.0
    %791 = vmatpush1.msra.mxu0 0.0
    %792 = vmatprep.subr.mxu0 0.0
    %793 = vmatpush1.msra.mxu0 0.0
    %794 = vmatprep.subr.mxu0 0.0
    %795 = vmatpush1.msra.mxu0 0.0
    %796 = vmatprep.subr.mxu0 0.0
    %797 = vmatpush1.msra.mxu0 0.0
    %798 = vmatprep.subr.mxu0 0.0
    %799 = vmatpush1.msra.mxu0 0.0
    %800 = vmatprep.subr.mxu0 0.0
    %801 = vmatpush1.msra.mxu0 0.0
    %802 = vmatprep.subr.mxu0 0.0
    %803 = vmatpush1.msra.mxu0 0.0
    %804 = vmatprep.subr.mxu0 0.0
    %805 = vmatpush1.msra.mxu0 0.0
    %806 = vmatprep.subr.mxu0 0.0
    %807 = vmatpush1.msra.mxu0 0.0
    %808 = vmatprep.subr.mxu0 0.0
    %809 = vmatpush1.msra.mxu0 0.0
    %810 = vmatprep.subr.mxu0 0.0
    %811 = vmatpush1.msra.mxu0 0.0
    %812 = vmatprep.subr.mxu0 0.0
    %813 = vmatpush1.msra.mxu0 0.0
    %814 = vmatprep.subr.mxu0 0.0
    %815 = vmatpush1.msra.mxu0 0.0
    %816 = vmatprep.subr.mxu0 0.0
    %817 = vmatpush1.msra.mxu0 0.0
    %818 = vmatprep.subr.mxu0 0.0
    %819 = vmatpush1.msra.mxu0 0.0
    %820 = vmatprep.subr.mxu0 0.0
    %821 = vmatpush1.msra.mxu0 0.0
    %822 = vmatprep.subr.mxu0 0.0
    %823 = vmatpush1.msra.mxu0 0.0
    %824 = vmatprep.subr.mxu0 0.0
    %825 = vmatpush1.msra.mxu0 0.0
    %826 = vmatprep.subr.mxu0 0.0
    %827 = vmatpush1.msra.mxu0 0.0
    %828 = vmatprep.mubr.f32.mxu0 0.0
    %829 = vmatmul.mubr.f32.gmra.mrb[0].mxu0 %v762
    %v830 = vpop.f32.mrb[0].mxu0
    %v831 = vadd.f32 0.0, %v830
    %v832 = vpop.f32.mrb[0].mxu0
    %833 = vdwg.mxu0
    %835 = vrot.lane.b32.xlu0 %v499, 8
    %v836 = vpop.permute.xlu0 %835
    %839 = vrot.lane.b32.xlu0 %v665, 16
    %v840 = vpop.permute.xlu0 %839
    %843 = vrot.lane.b32.xlu0 %v831, 24
    %v844 = vpop.permute.xlu0 %843
    %v846 = vsel %vm173, %v333, %v836
    %vm847 = vcmask 130048
    %v848 = vsel %vm847, %v846, %v840
    %vm849 = vcmask 195584
    %v850 = vsel %vm849, %v848, %v844
    %852 = vrot.lane.b32.xlu0 %v167, 96
    %v853 = vpop.permute.xlu0 %852
    %v854 = vsel %vm173, %v167, 0
    %v856 = vsel %vm173, %v853, 0
    %858 = vmatprep.subr.mxu0 0.0
    %859 = vmatpush1.xpose.msra.mxu0 %v856
    %860 = vmatprep.subr.mxu0 0.0
    %861 = vmatpush1.xpose.msra.mxu0 0.0
    %862 = vmatprep.subr.mxu0 0.0
    %863 = vmatpush1.xpose.msra.mxu0 0.0
    %864 = vmatprep.subr.mxu0 0.0
    %865 = vmatpush1.xpose.msra.mxu0 0.0
    %866 = vmatprep.subr.mxu0 0.0
    %867 = vmatpush1.xpose.msra.mxu0 0.0
    %868 = vmatprep.subr.mxu0 0.0
    %869 = vmatpush1.xpose.msra.mxu0 0.0
    %870 = vmatprep.subr.mxu0 0.0
    %871 = vmatpush1.xpose.msra.mxu0 0.0
    %872 = vmatprep.subr.mxu0 0.0
    %873 = vmatpush1.xpose.msra.mxu0 0.0
    %874 = vmatprep.subr.mxu0 0.0
    %875 = vmatpush1.xpose.msra.mxu0 0.0
    %876 = vmatprep.subr.mxu0 0.0
    %877 = vmatpush1.xpose.msra.mxu0 0.0
    %878 = vmatprep.subr.mxu0 0.0
    %879 = vmatpush1.xpose.msra.mxu0 0.0
    %880 = vmatprep.subr.mxu0 0.0
    %881 = vmatpush1.xpose.msra.mxu0 0.0
    %882 = vmatprep.subr.mxu0 0.0
    %883 = vmatpush1.xpose.msra.mxu0 0.0
    %884 = vmatprep.subr.mxu0 0.0
    %885 = vmatpush1.xpose.msra.mxu0 0.0
    %886 = vmatprep.subr.mxu0 0.0
    %887 = vmatpush1.xpose.msra.mxu0 0.0
    %888 = vmatprep.subr.mxu0 0.0
    %889 = vmatpush1.xpose.msra.mxu0 0.0
    %890 = vmatprep.subr.mxu0 0.0
    %891 = vmatpush1.xpose.msra.mxu0 0.0
    %892 = vmatprep.subr.mxu0 0.0
    %893 = vmatpush1.xpose.msra.mxu0 0.0
    %894 = vmatprep.subr.mxu0 0.0
    %895 = vmatpush1.xpose.msra.mxu0 0.0
    %896 = vmatprep.subr.mxu0 0.0
    %897 = vmatpush1.xpose.msra.mxu0 0.0
    %898 = vmatprep.subr.mxu0 0.0
    %899 = vmatpush1.xpose.msra.mxu0 0.0
    %900 = vmatprep.subr.mxu0 0.0
    %901 = vmatpush1.xpose.msra.mxu0 0.0
    %902 = vmatprep.subr.mxu0 0.0
    %903 = vmatpush1.xpose.msra.mxu0 0.0
    %904 = vmatprep.subr.mxu0 0.0
    %905 = vmatpush1.xpose.msra.mxu0 0.0
    %906 = vmatprep.subr.mxu0 0.0
    %907 = vmatpush1.xpose.msra.mxu0 0.0
    %908 = vmatprep.subr.mxu0 0.0
    %909 = vmatpush1.xpose.msra.mxu0 0.0
    %910 = vmatprep.subr.mxu0 0.0
    %911 = vmatpush1.xpose.msra.mxu0 0.0
    %912 = vmatprep.subr.mxu0 0.0
    %913 = vmatpush1.xpose.msra.mxu0 0.0
    %914 = vmatprep.subr.mxu0 0.0
    %915 = vmatpush1.xpose.msra.mxu0 0.0
    %916 = vmatprep.subr.mxu0 0.0
    %917 = vmatpush1.xpose.msra.mxu0 0.0
    %918 = vmatprep.subr.mxu0 0.0
    %919 = vmatpush1.xpose.msra.mxu0 0.0
    %920 = vmatprep.subr.mxu0 0.0
    %921 = vmatpush1.xpose.msra.mxu0 0.0
    %922 = vmatprep.mubr.f32.mxu0 0.0
    %923 = vmatmul.mubr.f32.gmra.mrb[0].mxu0 %v854
    %v924 = vpop.f32.mrb[0].mxu0
    %v925 = vadd.f32 0.0, %v924
    %v926 = vpop.f32.mrb[0].mxu0
    %927 = vdwg.mxu0
    %v928 = vmul.f32 %v925, 0.35355338
    %v929 = vsel %vm173, %v928, -inf
    %930 = vmax.xlane.f32.xlu0 %v929
    %v931 = vpop.xlane.xlu0 %930
    %v932 = vsub.f32 %v928, %v931
    %v933 = vmul.f32 %v932, 1.442695
    %v934 = vpow.pop %v933
    %v935 = vsel %vm173, %v934, 0.0
    %936 = vadd.xlane.f32.xlu0 %v935
    %v937 = vpop.xlane.xlu0 %936
    %v938 = vrcp.pop %v937
    %v939 = vmul.f32 %v934, %v938
    %940 = vrot.lane.b32.xlu0 %v167, 64
    %v941 = vpop.permute.xlu0 %940
    %v944 = vsel %vm173, %v939, 0
    %946 = vmatprep.subr.mxu0 0.0
    %947 = vmatpush1.msra.mxu0 %v941
    %948 = vmatprep.subr.mxu0 0.0
    %949 = vmatpush1.msra.mxu0 0.0
    %950 = vmatprep.subr.mxu0 0.0
    %951 = vmatpush1.msra.mxu0 0.0
    %952 = vmatprep.subr.mxu0 0.0
    %953 = vmatpush1.msra.mxu0 0.0
    %954 = vmatprep.subr.mxu0 0.0
    %955 = vmatpush1.msra.mxu0 0.0
    %956 = vmatprep.subr.mxu0 0.0
    %957 = vmatpush1.msra.mxu0 0.0
    %958 = vmatprep.subr.mxu0 0.0
    %959 = vmatpush1.msra.mxu0 0.0
    %960 = vmatprep.subr.mxu0 0.0
    %961 = vmatpush1.msra.mxu0 0.0
    %962 = vmatprep.subr.mxu0 0.0
    %963 = vmatpush1.msra.mxu0 0.0
    %964 = vmatprep.subr.mxu0 0.0
    %965 = vmatpush1.msra.mxu0 0.0
    %966 = vmatprep.subr.mxu0 0.0
    %967 = vmatpush1.msra.mxu0 0.0
    %968 = vmatprep.subr.mxu0 0.0
    %969 = vmatpush1.msra.mxu0 0.0
    %970 = vmatprep.subr.mxu0 0.0
    %971 = vmatpush1.msra.mxu0 0.0
    %972 = vmatprep.subr.mxu0 0.0
    %973 = vmatpush1.msra.mxu0 0.0
    %974 = vmatprep.subr.mxu0 0.0
    %975 = vmatpush1.msra.mxu0 0.0
    %976 = vmatprep.subr.mxu0 0.0
    %977 = vmatpush1.msra.mxu0 0.0
    %978 = vmatprep.subr.mxu0 0.0
    %979 = vmatpush1.msra.mxu0 0.0
    %980 = vmatprep.subr.mxu0 0.0
    %981 = vmatpush1.msra.mxu0 0.0
    %982 = vmatprep.subr.mxu0 0.0
    %983 = vmatpush1.msra.mxu0 0.0
    %984 = vmatprep.subr.mxu0 0.0
    %985 = vmatpush1.msra.mxu0 0.0
    %986 = vmatprep.subr.mxu0 0.0
    %987 = vmatpush1.msra.mxu0 0.0
    %988 = vmatprep.subr.mxu0 0.0
    %989 = vmatpush1.msra.mxu0 0.0
    %990 = vmatprep.subr.mxu0 0.0
    %991 = vmatpush1.msra.mxu0 0.0
    %992 = vmatprep.subr.mxu0 0.0
    %993 = vmatpush1.msra.mxu0 0.0
    %994 = vmatprep.subr.mxu0 0.0
    %995 = vmatpush1.msra.mxu0 0.0
    %996 = vmatprep.subr.mxu0 0.0
    %997 = vmatpush1.msra.mxu0 0.0
    %998 = vmatprep.subr.mxu0 0.0
    %999 = vmatpush1.msra.mxu0 0.0
    %1000 = vmatprep.subr.mxu0 0.0
    %1001 = vmatpush1.msra.mxu0 0.0
    %1002 = vmatprep.subr.mxu0 0.0
    %1003 = vmatpush1.msra.mxu0 0.0
    %1004 = vmatprep.subr.mxu0 0.0
    %1005 = vmatpush1.msra.mxu0 0.0
    %1006 = vmatprep.subr.mxu0 0.0
    %1007 = vmatpush1.msra.mxu0 0.0
    %1008 = vmatprep.subr.mxu0 0.0
    %1009 = vmatpush1.msra.mxu0 0.0
    %1010 = vmatprep.mubr.f32.mxu0 0.0
    %1011 = vmatmul.mubr.f32.gmra.mrb[0].mxu0 %v944
    %v1012 = vpop.f32.mrb[0].mxu0
    %v1013 = vadd.f32 0.0, %v1012
    %v1014 = vpop.f32.mrb[0].mxu0
    %1015 = vdwg.mxu0
    %1016 = vrot.lane.b32.xlu0 %v167, 120
    %v1017 = vpop.permute.xlu0 %1016
    %1018 = vrot.lane.b32.xlu0 %v167, 88
    %v1019 = vpop.permute.xlu0 %1018
    %v1020 = vsel %vm173, %v1017, 0
    %v1022 = vsel %vm173, %v1019, 0
    %1024 = vmatprep.subr.mxu0 0.0
    %1025 = vmatpush1.xpose.msra.mxu0 %v1022
    %1026 = vmatprep.subr.mxu0 0.0
    %1027 = vmatpush1.xpose.msra.mxu0 0.0
    %1028 = vmatprep.subr.mxu0 0.0
    %1029 = vmatpush1.xpose.msra.mxu0 0.0
    %1030 = vmatprep.subr.mxu0 0.0
    %1031 = vmatpush1.xpose.msra.mxu0 0.0
    %1032 = vmatprep.subr.mxu0 0.0
    %1033 = vmatpush1.xpose.msra.mxu0 0.0
    %1034 = vmatprep.subr.mxu0 0.0
    %1035 = vmatpush1.xpose.msra.mxu0 0.0
    %1036 = vmatprep.subr.mxu0 0.0
    %1037 = vmatpush1.xpose.msra.mxu0 0.0
    %1038 = vmatprep.subr.mxu0 0.0
    %1039 = vmatpush1.xpose.msra.mxu0 0.0
    %1040 = vmatprep.subr.mxu0 0.0
    %1041 = vmatpush1.xpose.msra.mxu0 0.0
    %1042 = vmatprep.subr.mxu0 0.0
    %1043 = vmatpush1.xpose.msra.mxu0 0.0
    %1044 = vmatprep.subr.mxu0 0.0
    %1045 = vmatpush1.xpose.msra.mxu0 0.0
    %1046 = vmatprep.subr.mxu0 0.0
    %1047 = vmatpush1.xpose.msra.mxu0 0.0
    %1048 = vmatprep.subr.mxu0 0.0
    %1049 = vmatpush1.xpose.msra.mxu0 0.0
    %1050 = vmatprep.subr.mxu0 0.0
    %1051 = vmatpush1.xpose.msra.mxu0 0.0
    %1052 = vmatprep.subr.mxu0 0.0
    %1053 = vmatpush1.xpose.msra.mxu0 0.0
    %1054 = vmatprep.subr.mxu0 0.0
    %1055 = vmatpush1.xpose.msra.mxu0 0.0
    %1056 = vmatprep.subr.mxu0 0.0
    %1057 = vmatpush1.xpose.msra.mxu0 0.0
    %1058 = vmatprep.subr.mxu0 0.0
    %1059 = vmatpush1.xpose.msra.mxu0 0.0
    %1060 = vmatprep.subr.mxu0 0.0
    %1061 = vmatpush1.xpose.msra.mxu0 0.0
    %1062 = vmatprep.subr.mxu0 0.0
    %1063 = vmatpush1.xpose.msra.mxu0 0.0
    %1064 = vmatprep.subr.mxu0 0.0
    %1065 = vmatpush1.xpose.msra.mxu0 0.0
    %1066 = vmatprep.subr.mxu0 0.0
    %1067 = vmatpush1.xpose.msra.mxu0 0.0
    %1068 = vmatprep.subr.mxu0 0.0
    %1069 = vmatpush1.xpose.msra.mxu0 0.0
    %1070 = vmatprep.subr.mxu0 0.0
    %1071 = vmatpush1.xpose.msra.mxu0 0.0
    %1072 = vmatprep.subr.mxu0 0.0
    %1073 = vmatpush1.xpose.msra.mxu0 0.0
    %1074 = vmatprep.subr.mxu0 0.0
    %1075 = vmatpush1.xpose.msra.mxu0 0.0
    %1076 = vmatprep.subr.mxu0 0.0
    %1077 = vmatpush1.xpose.msra.mxu0 0.0
    %1078 = vmatprep.subr.mxu0 0.0
    %1079 = vmatpush1.xpose.msra.mxu0 0.0
    %1080 = vmatprep.subr.mxu0 0.0
    %1081 = vmatpush1.xpose.msra.mxu0 0.0
    %1082 = vmatprep.subr.mxu0 0.0
    %1083 = vmatpush1.xpose.msra.mxu0 0.0
    %1084 = vmatprep.subr.mxu0 0.0
    %1085 = vmatpush1.xpose.msra.mxu0 0.0
    %1086 = vmatprep.subr.mxu0 0.0
    %1087 = vmatpush1.xpose.msra.mxu0 0.0
    %1088 = vmatprep.mubr.f32.mxu0 0.0
    %1089 = vmatmul.mubr.f32.gmra.mrb[0].mxu0 %v1020
    %v1090 = vpop.f32.mrb[0].mxu0
    %v1091 = vadd.f32 0.0, %v1090
    %v1092 = vpop.f32.mrb[0].mxu0
    %1093 = vdwg.mxu0
    %v1094 = vmul.f32 %v1091, 0.35355338
    %v1095 = vsel %vm173, %v1094, -inf
    %1096 = vmax.xlane.f32.xlu0 %v1095
    %v1097 = vpop.xlane.xlu0 %1096
    %v1098 = vsub.f32 %v1094, %v1097
    %v1099 = vmul.f32 %v1098, 1.442695
    %v1100 = vpow.pop %v1099
    %v1101 = vsel %vm173, %v1100, 0.0
    %1102 = vadd.xlane.f32.xlu0 %v1101
    %v1103 = vpop.xlane.xlu0 %1102
    %v1104 = vrcp.pop %v1103
    %v1105 = vmul.f32 %v1100, %v1104
    %1106 = vrot.lane.b32.xlu0 %v167, 56
    %v1107 = vpop.permute.xlu0 %1106
    %v1110 = vsel %vm173, %v1105, 0
    %1112 = vmatprep.subr.mxu0 0.0
    %1113 = vmatpush1.msra.mxu0 %v1107
    %1114 = vmatprep.subr.mxu0 0.0
    %1115 = vmatpush1.msra.mxu0 0.0
    %1116 = vmatprep.subr.mxu0 0.0
    %1117 = vmatpush1.msra.mxu0 0.0
    %1118 = vmatprep.subr.mxu0 0.0
    %1119 = vmatpush1.msra.mxu0 0.0
    %1120 = vmatprep.subr.mxu0 0.0
    %1121 = vmatpush1.msra.mxu0 0.0
    %1122 = vmatprep.subr.mxu0 0.0
    %1123 = vmatpush1.msra.mxu0 0.0
    %1124 = vmatprep.subr.mxu0 0.0
    %1125 = vmatpush1.msra.mxu0 0.0
    %1126 = vmatprep.subr.mxu0 0.0
    %1127 = vmatpush1.msra.mxu0 0.0
    %1128 = vmatprep.subr.mxu0 0.0
    %1129 = vmatpush1.msra.mxu0 0.0
    %1130 = vmatprep.subr.mxu0 0.0
    %1131 = vmatpush1.msra.mxu0 0.0
    %1132 = vmatprep.subr.mxu0 0.0
    %1133 = vmatpush1.msra.mxu0 0.0
    %1134 = vmatprep.subr.mxu0 0.0
    %1135 = vmatpush1.msra.mxu0 0.0
    %1136 = vmatprep.subr.mxu0 0.0
    %1137 = vmatpush1.msra.mxu0 0.0
    %1138 = vmatprep.subr.mxu0 0.0
    %1139 = vmatpush1.msra.mxu0 0.0
    %1140 = vmatprep.subr.mxu0 0.0
    %1141 = vmatpush1.msra.mxu0 0.0
    %1142 = vmatprep.subr.mxu0 0.0
    %1143 = vmatpush1.msra.mxu0 0.0
    %1144 = vmatprep.subr.mxu0 0.0
    %1145 = vmatpush1.msra.mxu0 0.0
    %1146 = vmatprep.subr.mxu0 0.0
    %1147 = vmatpush1.msra.mxu0 0.0
    %1148 = vmatprep.subr.mxu0 0.0
    %1149 = vmatpush1.msra.mxu0 0.0
    %1150 = vmatprep.subr.mxu0 0.0
    %1151 = vmatpush1.msra.mxu0 0.0
    %1152 = vmatprep.subr.mxu0 0.0
    %1153 = vmatpush1.msra.mxu0 0.0
    %1154 = vmatprep.subr.mxu0 0.0
    %1155 = vmatpush1.msra.mxu0 0.0
    %1156 = vmatprep.subr.mxu0 0.0
    %1157 = vmatpush1.msra.mxu0 0.0
    %1158 = vmatprep.subr.mxu0 0.0
    %1159 = vmatpush1.msra.mxu0 0.0
    %1160 = vmatprep.subr.mxu0 0.0
    %1161 = vmatpush1.msra.mxu0 0.0
    %1162 = vmatprep.subr.mxu0 0.0
    %1163 = vmatpush1.msra.mxu0 0.0
    %1164 = vmatprep.subr.mxu0 0.0
    %1165 = vmatpush1.msra.mxu0 0.0
    %1166 = vmatprep.subr.mxu0 0.0
    %1167 = vmatpush1.msra.mxu0 0.0
    %1168 = vmatprep.subr.mxu0 0.0
    %1169 = vmatpush1.msra.mxu0 0.0
    %1170 = vmatprep.subr.mxu0 0.0
    %1171 = vmatpush1.msra.mxu0 0.0
    %1172 = vmatprep.subr.mxu0 0.0
    %1173 = vmatpush1.msra.mxu0 0.0
    %1174 = vmatprep.subr.mxu0 0.0
    %1175 = vmatpush1.msra.mxu0 0.0
    %1176 = vmatprep.mubr.f32.mxu0 0.0
    %1177 = vmatmul.mubr.f32.gmra.mrb[0].mxu0 %v1110
    %v1178 = vpop.f32.mrb[0].mxu0
    %v1179 = vadd.f32 0.0, %v1178
    %v1180 = vpop.f32.mrb[0].mxu0
    %1181 = vdwg.mxu0
    %1182 = vrot.lane.b32.xlu0 %v167, 112
    %v1183 = vpop.permute.xlu0 %1182
    %1184 = vrot.lane.b32.xlu0 %v167, 80
    %v1185 = vpop.permute.xlu0 %1184
    %v1186 = vsel %vm173, %v1183, 0
    %v1188 = vsel %vm173, %v1185, 0
    %1190 = vmatprep.subr.mxu0 0.0
    %1191 = vmatpush1.xpose.msra.mxu0 %v1188
    %1192 = vmatprep.subr.mxu0 0.0
    %1193 = vmatpush1.xpose.msra.mxu0 0.0
    %1194 = vmatprep.subr.mxu0 0.0
    %1195 = vmatpush1.xpose.msra.mxu0 0.0
    %1196 = vmatprep.subr.mxu0 0.0
    %1197 = vmatpush1.xpose.msra.mxu0 0.0
    %1198 = vmatprep.subr.mxu0 0.0
    %1199 = vmatpush1.xpose.msra.mxu0 0.0
    %1200 = vmatprep.subr.mxu0 0.0
    %1201 = vmatpush1.xpose.msra.mxu0 0.0
    %1202 = vmatprep.subr.mxu0 0.0
    %1203 = vmatpush1.xpose.msra.mxu0 0.0
    %1204 = vmatprep.subr.mxu0 0.0
    %1205 = vmatpush1.xpose.msra.mxu0 0.0
    %1206 = vmatprep.subr.mxu0 0.0
    %1207 = vmatpush1.xpose.msra.mxu0 0.0
    %1208 = vmatprep.subr.mxu0 0.0
    %1209 = vmatpush1.xpose.msra.mxu0 0.0
    %1210 = vmatprep.subr.mxu0 0.0
    %1211 = vmatpush1.xpose.msra.mxu0 0.0
    %1212 = vmatprep.subr.mxu0 0.0
    %1213 = vmatpush1.xpose.msra.mxu0 0.0
    %1214 = vmatprep.subr.mxu0 0.0
    %1215 = vmatpush1.xpose.msra.mxu0 0.0
    %1216 = vmatprep.subr.mxu0 0.0
    %1217 = vmatpush1.xpose.msra.mxu0 0.0
    %1218 = vmatprep.subr.mxu0 0.0
    %1219 = vmatpush1.xpose.msra.mxu0 0.0
    %1220 = vmatprep.subr.mxu0 0.0
    %1221 = vmatpush1.xpose.msra.mxu0 0.0
    %1222 = vmatprep.subr.mxu0 0.0
    %1223 = vmatpush1.xpose.msra.mxu0 0.0
    %1224 = vmatprep.subr.mxu0 0.0
    %1225 = vmatpush1.xpose.msra.mxu0 0.0
    %1226 = vmatprep.subr.mxu0 0.0
    %1227 = vmatpush1.xpose.msra.mxu0 0.0
    %1228 = vmatprep.subr.mxu0 0.0
    %1229 = vmatpush1.xpose.msra.mxu0 0.0
    %1230 = vmatprep.subr.mxu0 0.0
    %1231 = vmatpush1.xpose.msra.mxu0 0.0
    %1232 = vmatprep.subr.mxu0 0.0
    %1233 = vmatpush1.xpose.msra.mxu0 0.0
    %1234 = vmatprep.subr.mxu0 0.0
    %1235 = vmatpush1.xpose.msra.mxu0 0.0
    %1236 = vmatprep.subr.mxu0 0.0
    %1237 = vmatpush1.xpose.msra.mxu0 0.0
    %1238 = vmatprep.subr.mxu0 0.0
    %1239 = vmatpush1.xpose.msra.mxu0 0.0
    %1240 = vmatprep.subr.mxu0 0.0
    %1241 = vmatpush1.xpose.msra.mxu0 0.0
    %1242 = vmatprep.subr.mxu0 0.0
    %1243 = vmatpush1.xpose.msra.mxu0 0.0
    %1244 = vmatprep.subr.mxu0 0.0
    %1245 = vmatpush1.xpose.msra.mxu0 0.0
    %1246 = vmatprep.subr.mxu0 0.0
    %1247 = vmatpush1.xpose.msra.mxu0 0.0
    %1248 = vmatprep.subr.mxu0 0.0
    %1249 = vmatpush1.xpose.msra.mxu0 0.0
    %1250 = vmatprep.subr.mxu0 0.0
    %1251 = vmatpush1.xpose.msra.mxu0 0.0
    %1252 = vmatprep.subr.mxu0 0.0
    %1253 = vmatpush1.xpose.msra.mxu0 0.0
    %1254 = vmatprep.mubr.f32.mxu0 0.0
    %1255 = vmatmul.mubr.f32.gmra.mrb[0].mxu0 %v1186
    %v1256 = vpop.f32.mrb[0].mxu0
    %v1257 = vadd.f32 0.0, %v1256
    %v1258 = vpop.f32.mrb[0].mxu0
    %1259 = vdwg.mxu0
    %v1260 = vmul.f32 %v1257, 0.35355338
    %v1261 = vsel %vm173, %v1260, -inf
    %1262 = vmax.xlane.f32.xlu0 %v1261
    %v1263 = vpop.xlane.xlu0 %1262
    %v1264 = vsub.f32 %v1260, %v1263
    %v1265 = vmul.f32 %v1264, 1.442695
    %v1266 = vpow.pop %v1265
    %v1267 = vsel %vm173, %v1266, 0.0
    %1268 = vadd.xlane.f32.xlu0 %v1267
    %v1269 = vpop.xlane.xlu0 %1268
    %v1270 = vrcp.pop %v1269
    %v1271 = vmul.f32 %v1266, %v1270
    %1272 = vrot.lane.b32.xlu0 %v167, 48
    %v1273 = vpop.permute.xlu0 %1272
    %v1276 = vsel %vm173, %v1271, 0
    %1278 = vmatprep.subr.mxu0 0.0
    %1279 = vmatpush1.msra.mxu0 %v1273
    %1280 = vmatprep.subr.mxu0 0.0
    %1281 = vmatpush1.msra.mxu0 0.0
    %1282 = vmatprep.subr.mxu0 0.0
    %1283 = vmatpush1.msra.mxu0 0.0
    %1284 = vmatprep.subr.mxu0 0.0
    %1285 = vmatpush1.msra.mxu0 0.0
    %1286 = vmatprep.subr.mxu0 0.0
    %1287 = vmatpush1.msra.mxu0 0.0
    %1288 = vmatprep.subr.mxu0 0.0
    %1289 = vmatpush1.msra.mxu0 0.0
    %1290 = vmatprep.subr.mxu0 0.0
    %1291 = vmatpush1.msra.mxu0 0.0
    %1292 = vmatprep.subr.mxu0 0.0
    %1293 = vmatpush1.msra.mxu0 0.0
    %1294 = vmatprep.subr.mxu0 0.0
    %1295 = vmatpush1.msra.mxu0 0.0
    %1296 = vmatprep.subr.mxu0 0.0
    %1297 = vmatpush1.msra.mxu0 0.0
    %1298 = vmatprep.subr.mxu0 0.0
    %1299 = vmatpush1.msra.mxu0 0.0
    %1300 = vmatprep.subr.mxu0 0.0
    %1301 = vmatpush1.msra.mxu0 0.0
    %1302 = vmatprep.subr.mxu0 0.0
    %1303 = vmatpush1.msra.mxu0 0.0
    %1304 = vmatprep.subr.mxu0 0.0
    %1305 = vmatpush1.msra.mxu0 0.0
    %1306 = vmatprep.subr.mxu0 0.0
    %1307 = vmatpush1.msra.mxu0 0.0
    %1308 = vmatprep.subr.mxu0 0.0
    %1309 = vmatpush1.msra.mxu0 0.0
    %1310 = vmatprep.subr.mxu0 0.0
    %1311 = vmatpush1.msra.mxu0 0.0
    %1312 = vmatprep.subr.mxu0 0.0
    %1313 = vmatpush1.msra.mxu0 0.0
    %1314 = vmatprep.subr.mxu0 0.0
    %1315 = vmatpush1.msra.mxu0 0.0
    %1316 = vmatprep.subr.mxu0 0.0
    %1317 = vmatpush1.msra.mxu0 0.0
    %1318 = vmatprep.subr.mxu0 0.0
    %1319 = vmatpush1.msra.mxu0 0.0
    %1320 = vmatprep.subr.mxu0 0.0
    %1321 = vmatpush1.msra.mxu0 0.0
    %1322 = vmatprep.subr.mxu0 0.0
    %1323 = vmatpush1.msra.mxu0 0.0
    %1324 = vmatprep.subr.mxu0 0.0
    %1325 = vmatpush1.msra.mxu0 0.0
    %1326 = vmatprep.subr.mxu0 0.0
    %1327 = vmatpush1.msra.mxu0 0.0
    %1328 = vmatprep.subr.mxu0 0.0
    %1329 = vmatpush1.msra.mxu0 0.0
    %1330 = vmatprep.subr.mxu0 0.0
    %1331 = vmatpush1.msra.mxu0 0.0
    %1332 = vmatprep.subr.mxu0 0.0
    %1333 = vmatpush1.msra.mxu0 0.0
    %1334 = vmatprep.subr.mxu0 0.0
    %1335 = vmatpush1.msra.mxu0 0.0
    %1336 = vmatprep.subr.mxu0 0.0
    %1337 = vmatpush1.msra.mxu0 0.0
    %1338 = vmatprep.subr.mxu0 0.0
    %1339 = vmatpush1.msra.mxu0 0.0
    %1340 = vmatprep.subr.mxu0 0.0
    %1341 = vmatpush1.msra.mxu0 0.0
    %1342 = vmatprep.mubr.f32.mxu0 0.0
    %1343 = vmatmul.mubr.f32.gmra.mrb[0].mxu0 %v1276
    %v1344 = vpop.f32.mrb[0].mxu0
    %v1345 = vadd.f32 0.0, %v1344
    %v1346 = vpop.f32.mrb[0].mxu0
    %1347 = vdwg.mxu0
    %1348 = vrot.lane.b32.xlu0 %v167, 104
    %v1349 = vpop.permute.xlu0 %1348
    %1350 = vrot.lane.b32.xlu0 %v167, 72
    %v1351 = vpop.permute.xlu0 %1350
    %v1352 = vsel %vm173, %v1349, 0
    %v1354 = vsel %vm173, %v1351, 0
    %1356 = vmatprep.subr.mxu0 0.0
    %1357 = vmatpush1.xpose.msra.mxu0 %v1354
    %1358 = vmatprep.subr.mxu0 0.0
    %1359 = vmatpush1.xpose.msra.mxu0 0.0
    %1360 = vmatprep.subr.mxu0 0.0
    %1361 = vmatpush1.xpose.msra.mxu0 0.0
    %1362 = vmatprep.subr.mxu0 0.0
    %1363 = vmatpush1.xpose.msra.mxu0 0.0
    %1364 = vmatprep.subr.mxu0 0.0
    %1365 = vmatpush1.xpose.msra.mxu0 0.0
    %1366 = vmatprep.subr.mxu0 0.0
    %1367 = vmatpush1.xpose.msra.mxu0 0.0
    %1368 = vmatprep.subr.mxu0 0.0
    %1369 = vmatpush1.xpose.msra.mxu0 0.0
    %1370 = vmatprep.subr.mxu0 0.0
    %1371 = vmatpush1.xpose.msra.mxu0 0.0
    %1372 = vmatprep.subr.mxu0 0.0
    %1373 = vmatpush1.xpose.msra.mxu0 0.0
    %1374 = vmatprep.subr.mxu0 0.0
    %1375 = vmatpush1.xpose.msra.mxu0 0.0
    %1376 = vmatprep.subr.mxu0 0.0
    %1377 = vmatpush1.xpose.msra.mxu0 0.0
    %1378 = vmatprep.subr.mxu0 0.0
    %1379 = vmatpush1.xpose.msra.mxu0 0.0
    %1380 = vmatprep.subr.mxu0 0.0
    %1381 = vmatpush1.xpose.msra.mxu0 0.0
    %1382 = vmatprep.subr.mxu0 0.0
    %1383 = vmatpush1.xpose.msra.mxu0 0.0
    %1384 = vmatprep.subr.mxu0 0.0
    %1385 = vmatpush1.xpose.msra.mxu0 0.0
    %1386 = vmatprep.subr.mxu0 0.0
    %1387 = vmatpush1.xpose.msra.mxu0 0.0
    %1388 = vmatprep.subr.mxu0 0.0
    %1389 = vmatpush1.xpose.msra.mxu0 0.0
    %1390 = vmatprep.subr.mxu0 0.0
    %1391 = vmatpush1.xpose.msra.mxu0 0.0
    %1392 = vmatprep.subr.mxu0 0.0
    %1393 = vmatpush1.xpose.msra.mxu0 0.0
    %1394 = vmatprep.subr.mxu0 0.0
    %1395 = vmatpush1.xpose.msra.mxu0 0.0
    %1396 = vmatprep.subr.mxu0 0.0
    %1397 = vmatpush1.xpose.msra.mxu0 0.0
    %1398 = vmatprep.subr.mxu0 0.0
    %1399 = vmatpush1.xpose.msra.mxu0 0.0
    %1400 = vmatprep.subr.mxu0 0.0
    %1401 = vmatpush1.xpose.msra.mxu0 0.0
    %1402 = vmatprep.subr.mxu0 0.0
    %1403 = vmatpush1.xpose.msra.mxu0 0.0
    %1404 = vmatprep.subr.mxu0 0.0
    %1405 = vmatpush1.xpose.msra.mxu0 0.0
    %1406 = vmatprep.subr.mxu0 0.0
    %1407 = vmatpush1.xpose.msra.mxu0 0.0
    %1408 = vmatprep.subr.mxu0 0.0
    %1409 = vmatpush1.xpose.msra.mxu0 0.0
    %1410 = vmatprep.subr.mxu0 0.0
    %1411 = vmatpush1.xpose.msra.mxu0 0.0
    %1412 = vmatprep.subr.mxu0 0.0
    %1413 = vmatpush1.xpose.msra.mxu0 0.0
    %1414 = vmatprep.subr.mxu0 0.0
    %1415 = vmatpush1.xpose.msra.mxu0 0.0
    %1416 = vmatprep.subr.mxu0 0.0
    %1417 = vmatpush1.xpose.msra.mxu0 0.0
    %1418 = vmatprep.subr.mxu0 0.0
    %1419 = vmatpush1.xpose.msra.mxu0 0.0
    %1420 = vmatprep.mubr.f32.mxu0 0.0
    %1421 = vmatmul.mubr.f32.gmra.mrb[0].mxu0 %v1352
    %v1422 = vpop.f32.mrb[0].mxu0
    %v1423 = vadd.f32 0.0, %v1422
    %v1424 = vpop.f32.mrb[0].mxu0
    %1425 = vdwg.mxu0
    %v1426 = vmul.f32 %v1423, 0.35355338
    %v1427 = vsel %vm173, %v1426, -inf
    %1428 = vmax.xlane.f32.xlu0 %v1427
    %v1429 = vpop.xlane.xlu0 %1428
    %v1430 = vsub.f32 %v1426, %v1429
    %v1431 = vmul.f32 %v1430, 1.442695
    %v1432 = vpow.pop %v1431
    %v1433 = vsel %vm173, %v1432, 0.0
    %1434 = vadd.xlane.f32.xlu0 %v1433
    %v1435 = vpop.xlane.xlu0 %1434
    %v1436 = vrcp.pop %v1435
    %v1437 = vmul.f32 %v1432, %v1436
    %1438 = vrot.lane.b32.xlu0 %v167, 40
    %v1439 = vpop.permute.xlu0 %1438
    %v1442 = vsel %vm173, %v1437, 0
    %1444 = vmatprep.subr.mxu0 0.0
    %1445 = vmatpush1.msra.mxu0 %v1439
    %1446 = vmatprep.subr.mxu0 0.0
    %1447 = vmatpush1.msra.mxu0 0.0
    %1448 = vmatprep.subr.mxu0 0.0
    %1449 = vmatpush1.msra.mxu0 0.0
    %1450 = vmatprep.subr.mxu0 0.0
    %1451 = vmatpush1.msra.mxu0 0.0
    %1452 = vmatprep.subr.mxu0 0.0
    %1453 = vmatpush1.msra.mxu0 0.0
    %1454 = vmatprep.subr.mxu0 0.0
    %1455 = vmatpush1.msra.mxu0 0.0
    %1456 = vmatprep.subr.mxu0 0.0
    %1457 = vmatpush1.msra.mxu0 0.0
    %1458 = vmatprep.subr.mxu0 0.0
    %1459 = vmatpush1.msra.mxu0 0.0
    %1460 = vmatprep.subr.mxu0 0.0
    %1461 = vmatpush1.msra.mxu0 0.0
    %1462 = vmatprep.subr.mxu0 0.0
    %1463 = vmatpush1.msra.mxu0 0.0
    %1464 = vmatprep.subr.mxu0 0.0
    %1465 = vmatpush1.msra.mxu0 0.0
    %1466 = vmatprep.subr.mxu0 0.0
    %1467 = vmatpush1.msra.mxu0 0.0
    %1468 = vmatprep.subr.mxu0 0.0
    %1469 = vmatpush1.msra.mxu0 0.0
    %1470 = vmatprep.subr.mxu0 0.0
    %1471 = vmatpush1.msra.mxu0 0.0
    %1472 = vmatprep.subr.mxu0 0.0
    %1473 = vmatpush1.msra.mxu0 0.0
    %1474 = vmatprep.subr.mxu0 0.0
    %1475 = vmatpush1.msra.mxu0 0.0
    %1476 = vmatprep.subr.mxu0 0.0
    %1477 = vmatpush1.msra.mxu0 0.0
    %1478 = vmatprep.subr.mxu0 0.0
    %1479 = vmatpush1.msra.mxu0 0.0
    %1480 = vmatprep.subr.mxu0 0.0
    %1481 = vmatpush1.msra.mxu0 0.0
    %1482 = vmatprep.subr.mxu0 0.0
    %1483 = vmatpush1.msra.mxu0 0.0
    %1484 = vmatprep.subr.mxu0 0.0
    %1485 = vmatpush1.msra.mxu0 0.0
    %1486 = vmatprep.subr.mxu0 0.0
    %1487 = vmatpush1.msra.mxu0 0.0
    %1488 = vmatprep.subr.mxu0 0.0
    %1489 = vmatpush1.msra.mxu0 0.0
    %1490 = vmatprep.subr.mxu0 0.0
    %1491 = vmatpush1.msra.mxu0 0.0
    %1492 = vmatprep.subr.mxu0 0.0
    %1493 = vmatpush1.msra.mxu0 0.0
    %1494 = vmatprep.subr.mxu0 0.0
    %1495 = vmatpush1.msra.mxu0 0.0
    %1496 = vmatprep.subr.mxu0 0.0
    %1497 = vmatpush1.msra.mxu0 0.0
    %1498 = vmatprep.subr.mxu0 0.0
    %1499 = vmatpush1.msra.mxu0 0.0
    %1500 = vmatprep.subr.mxu0 0.0
    %1501 = vmatpush1.msra.mxu0 0.0
    %1502 = vmatprep.subr.mxu0 0.0
    %1503 = vmatpush1.msra.mxu0 0.0
    %1504 = vmatprep.subr.mxu0 0.0
    %1505 = vmatpush1.msra.mxu0 0.0
    %1506 = vmatprep.subr.mxu0 0.0
    %1507 = vmatpush1.msra.mxu0 0.0
    %1508 = vmatprep.mubr.f32.mxu0 0.0
    %1509 = vmatmul.mubr.f32.gmra.mrb[0].mxu0 %v1442
    %v1510 = vpop.f32.mrb[0].mxu0
    %v1511 = vadd.f32 0.0, %v1510
    %v1512 = vpop.f32.mrb[0].mxu0
    %1513 = vdwg.mxu0
    %1515 = vrot.lane.b32.xlu0 %v1179, 8
    %v1516 = vpop.permute.xlu0 %1515
    %1519 = vrot.lane.b32.xlu0 %v1345, 16
    %v1520 = vpop.permute.xlu0 %1519
    %1523 = vrot.lane.b32.xlu0 %v1511, 24
    %v1524 = vpop.permute.xlu0 %1523
    %v1526 = vsel %vm173, %v1013, %v1516
    %v1527 = vsel %vm847, %v1526, %v1520
    %v1528 = vsel %vm849, %v1527, %v1524
    %v1529 = vld [vmem:[#allocation2] sm:$0xff]
    %v1530 = vld [vmem:[#allocation2 + $0x8] sm:$0xff]
    %v1531 = vld [vmem:[#allocation2 + $0x10] sm:$0xff]
    %v1532 = vld [vmem:[#allocation2 + $0x18] sm:$0xff]
    %v1534 = vsel %vm39, %v850, 0
    %v1537 = vsel %vm39, %v1528, 0
    %1539 = vmatprep.subr.mxu0 0.0
    %1540 = vmatpush1.msra.mxu0 %v1529
    %1541 = vmatprep.subr.mxu0 0.0
    %1542 = vmatpush1.msra.mxu0 %v1530
    %1543 = vmatprep.subr.mxu0 0.0
    %1544 = vmatpush1.msra.mxu0 %v1531
    %1545 = vmatprep.subr.mxu0 0.0
    %1546 = vmatpush1.msra.mxu0 %v1532
    %1547 = vmatprep.subr.mxu0 0.0
    %1548 = vmatpush1.msra.mxu0 0.0
    %1549 = vmatprep.subr.mxu0 0.0
    %1550 = vmatpush1.msra.mxu0 0.0
    %1551 = vmatprep.subr.mxu0 0.0
    %1552 = vmatpush1.msra.mxu0 0.0
    %1553 = vmatprep.subr.mxu0 0.0
    %1554 = vmatpush1.msra.mxu0 0.0
    %1555 = vmatprep.subr.mxu0 0.0
    %1556 = vmatpush1.msra.mxu0 0.0
    %1557 = vmatprep.subr.mxu0 0.0
    %1558 = vmatpush1.msra.mxu0 0.0
    %1559 = vmatprep.subr.mxu0 0.0
    %1560 = vmatpush1.msra.mxu0 0.0
    %1561 = vmatprep.subr.mxu0 0.0
    %1562 = vmatpush1.msra.mxu0 0.0
    %1563 = vmatprep.subr.mxu0 0.0
    %1564 = vmatpush1.msra.mxu0 0.0
    %1565 = vmatprep.subr.mxu0 0.0
    %1566 = vmatpush1.msra.mxu0 0.0
    %1567 = vmatprep.subr.mxu0 0.0
    %1568 = vmatpush1.msra.mxu0 0.0
    %1569 = vmatprep.subr.mxu0 0.0
    %1570 = vmatpush1.msra.mxu0 0.0
    %1571 = vmatprep.subr.mxu0 0.0
    %1572 = vmatpush1.msra.mxu0 0.0
    %1573 = vmatprep.subr.mxu0 0.0
    %1574 = vmatpush1.msra.mxu0 0.0
    %1575 = vmatprep.subr.mxu0 0.0
    %1576 = vmatpush1.msra.mxu0 0.0
    %1577 = vmatprep.subr.mxu0 0.0
    %1578 = vmatpush1.msra.mxu0 0.0
    %1579 = vmatprep.subr.mxu0 0.0
    %1580 = vmatpush1.msra.mxu0 0.0
    %1581 = vmatprep.subr.mxu0 0.0
    %1582 = vmatpush1.msra.mxu0 0.0
    %1583 = vmatprep.subr.mxu0 0.0
    %1584 = vmatpush1.msra.mxu0 0.0
    %1585 = vmatprep.subr.mxu0 0.0
    %1586 = vmatpush1.msra.mxu0 0.0
    %1587 = vmatprep.subr.mxu0 0.0
    %1588 = vmatpush1.msra.mxu0 0.0
    %1589 = vmatprep.subr.mxu0 0.0
    %1590 = vmatpush1.msra.mxu0 0.0
    %1591 = vmatprep.subr.mxu0 0.0
    %1592 = vmatpush1.msra.mxu0 0.0
    %1593 = vmatprep.subr.mxu0 0.0
    %1594 = vmatpush1.msra.mxu0 0.0
    %1595 = vmatprep.subr.mxu0 0.0
    %1596 = vmatpush1.msra.mxu0 0.0
    %1597 = vmatprep.subr.mxu0 0.0
    %1598 = vmatpush1.msra.mxu0 0.0
    %1599 = vmatprep.subr.mxu0 0.0
    %1600 = vmatpush1.msra.mxu0 0.0
    %1601 = vmatprep.subr.mxu0 0.0
    %1602 = vmatpush1.msra.mxu0 0.0
    %1603 = vmatprep.mubr.f32.mxu0 0.0
    %1604 = vmatmul.mubr.f32.gmra.mrb[0].mxu0 %v1534
    %v1605 = vpop.f32.mrb[0].mxu0
    %v1606 = vadd.f32 0.0, %v1605
    %v1607 = vpop.f32.mrb[0].mxu0
    %1608 = vmatprep.mubr.f32.mxu0 0.0
    %1609 = vmatmul.mubr.f32.gmra.mrb[0].mxu0 %v1537
    %v1610 = vpop.f32.mrb[0].mxu0
    %v1611 = vadd.f32 0.0, %v1610
    %v1612 = vpop.f32.mrb[0].mxu0
    %1613 = vdwg.mxu0
    %v1614 = vadd.f32 %v37, %v1606
    %v1615 = vadd.f32 %v38, %v1611
    %v1616 = vld [vmem:[%s5] sm:$0x1]
    %v1618 = vlaneseq
    %v1619 = vshrl.u32 %v1618, 7
    %v1620 = vsub.s32 0, %v1619
    %v1621 = vrot.slane %v1616, %v1620
    %v1623 = vadd.f32 %v1614, %v1621
    %v1624 = vadd.f32 %v1615, %v1621
    %1625 = vst.msk [vmem:[%s6] sm:$0xff] %vm39, %v1623
    %1626 = vst.msk [vmem:[%s6 + $0x8] sm:$0xff] %vm39, %v1624
    // Predicated region
    $region30: #{block_forward.1} parent=1 // pred_check
      _
    $region31: #{block_forward.1} parent=1 // pred_check_branch
      %1628 = sbr.rel (0) target = $region33
    $region32: #{block_forward.1} parent=1 // pred_region
      _
    $region33: #{block_forward.1} parent=1 // pred_fallthru
      _
    // Predicated region
    $region34: #{block_forward.1} parent=1 // pred_check
      _
    $region35: #{block_forward.1} parent=1 // pred_check_branch
      %1630 = sbr.rel (0) target = $region37
    $region36: #{block_forward.1} parent=1 // pred_region
      _
    $region37: #{block_forward.1} parent=1 // pred_fallthru
      _
    %1631 = vsyncpa [#allocation3], 1

</llo_original>
